<compile_context>
chip_gen: v6e
topology: v6e:2x2x1
jax: 0.10.0
libtpu: 0.0.40
codegen_flags: <defaults>
</compile_context>

<pallas_src>
import jax
import jax.numpy as jnp
from jax.experimental import pallas as pl
from jax.experimental.pallas import tpu as pltpu


def _round_up(x, m):
    return (x + m - 1) // m * m


# ----------------------------------------------------------------------------- kernel
def critic_kernel(x_ref, wx_ref, wh_ref, b_ref, w1_ref, b1_ref, w2_ref, b2_ref,
                  out_ref, xproj_ref):
    TB = out_ref.shape[0]              # batch tile
    T = x_ref.shape[0] // TB           # sequence length (x rows are batch-major: b*T + t)
    Hp = wh_ref.shape[0]               # packed per-gate width; gates occupy 4*Hp lanes
    G = 4 * Hp

    # ---- Hoisted input projection: ONE (TB*T, D) @ (D, 4Hp) MXU matmul with the bias
    #      folded in, staged to VMEM scratch so only (h, c) stay live across the loop.
    xproj_ref[...] = (jnp.dot(x_ref[...], wx_ref[...],
                              preferred_element_type=jnp.float32) + b_ref[...])

    wh = wh_ref[...]                   # (Hp, 4Hp) bf16, hoisted out of the recurrence
    h = jnp.zeros((TB, Hp), jnp.float32)
    c = jnp.zeros((TB, Hp), jnp.float32)

    def step(xp_t, h, c):
        # Only h @ Wh sits on the serial dependency chain (bf16 MXU, f32 accumulate).
        gates = xp_t + jnp.dot(h.astype(jnp.bfloat16), wh,
                               preferred_element_type=jnp.float32)        # (TB, 4Hp)
        # Single EUP tanh over the packed gates.  i/f/o pre-activations were pre-scaled
        # by 0.5 in the weights, so sigmoid(z) = 0.5*tanh(z/2) + 0.5 is just a VPU fma;
        # the g slab is a native tanh.  PyTorch LSTM gate order: i, f, g, o.
        # Pad lanes (when Hp > H) have zero weights/bias -> gates = 0 -> i/f/o = 0.5,
        # g = 0, so c_pad stays 0 and h_pad = 0.5*tanh(0) = 0.
        th = jnp.tanh(gates)
        i_g = 0.5 * th[:, 0 * Hp:1 * Hp] + 0.5
        f_g = 0.5 * th[:, 1 * Hp:2 * Hp] + 0.5
        g_g = th[:, 2 * Hp:3 * Hp]
        o_g = 0.5 * th[:, 3 * Hp:4 * Hp] + 0.5
        c_new = f_g * c + i_g * g_g
        h_new = o_g * jnp.tanh(c_new)
        return h_new, c_new

    # xproj rows are batch-major (row = b_local*T + t); a strided read gathers time t.
    if T <= 16:
        for t in range(T):                                  # full unroll: LLO interleave
            h, c = step(xproj_ref[pl.ds(t, TB, stride=T), :], h, c)
    else:
        def body(t, carry):
            h, c = carry
            return step(xproj_ref[pl.ds(t, TB, stride=T), :], h, c)
        h, c = jax.lax.fori_loop(0, T, body, (h, c), unroll=4)

    # ---- Value head: Linear -> ReLU -> VPU/XLU reduce (a VH->1 MXU matmul would waste
    #      the whole array on one output lane).
    hid = jnp.dot(h.astype(jnp.bfloat16), w1_ref[...],
                  preferred_element_type=jnp.float32) + b1_ref[...]
    hid = jnp.maximum(hid, 0.0)
    val = jnp.sum(hid * w2_ref[...], axis=-1, keepdims=True) + b2_ref[...]
    # Output is tiny (tb values per grid step); a lane-dense (1, tb) layout would need an
    # in-kernel transpose for negligible gain, so the column store is kept.
    out_ref[...] = val                                                    # (TB, 1)


# ----------------------------------------------------------------------------- wrapper
def critic_forward(s, kp, *, batch_tile=None):
    """s: (B, T, D) float, batch-first like nn.LSTM(batch_first=True)."""
    B, T, D = s.shape
    Hp = kp["wh"].shape[0]
    G = 4 * Hp

    if batch_tile is None:
        tb = min(B, 128)            # rows are the only MXU/ILP source (time axis is serial)
        if B // tb < 2 and B >= 16 and (B // 2) % 8 == 0:
            tb = B // 2             # grid >= 2 so v7x can shard over its 2 TensorCores
    else:
        tb = batch_tile
    assert B % tb == 0 and tb % 8 == 0, "batch tile must divide B and be a multiple of 8"

    # Batch-first flat view: no host-side time-major transpose / HBM round trip;
    # bf16 halves x DMA bytes and the in-VMEM x double buffer.
    x2d = s.reshape(B * T, D).astype(jnp.bfloat16)

    weight_keys = ("wx", "wh", "b", "w1", "b1", "w2", "b2")
    # VMEM budget: double-buffered x / out / weights + xproj scratch, with 2x headroom.
    est = (2 * tb * T * D * 2 + 2 * tb * 4 + tb * T * G * 4
           + 2 * sum(int(kp[k].size) * kp[k].dtype.itemsize for k in weight_keys))
    vmem_limit = int(min(max(2 * est, 32 << 20), 48 << 20))

    in_specs = [pl.BlockSpec((tb * T, D), lambda b: (b, 0))]              # x (batch-major rows)
    in_specs += [pl.BlockSpec(kp[k].shape, lambda b: (0, 0)) for k in weight_keys]
    out_spec = pl.BlockSpec((tb, 1), lambda b: (b, 0))

    return pl.pallas_call(
        critic_kernel,
        out_shape=jax.ShapeDtypeStruct((B, 1), jnp.float32),
        grid=(B // tb,),
        in_specs=in_specs,
        out_specs=out_spec,
        scratch_shapes=[pltpu.VMEM((tb * T, G), jnp.float32)],            # staged x-projection
        compiler_params=pltpu.CompilerParams(
            dimension_semantics=("parallel",),
            vmem_limit_bytes=vmem_limit),
    )(x2d, *(kp[k] for k in weight_keys))


# ----------------------------------------------------------------------------- params
def init_params(key, input_dim, hidden_dim, value_hidden):
    """Raw PyTorch-style parameters (f32), nn.LSTM / nn.Linear layouts."""
    ks = jax.random.split(key, 8)
    scale = 0.1
    return {
        "w_ih": scale * jax.random.normal(ks[0], (4 * hidden_dim, input_dim), jnp.float32),
        "w_hh": scale * jax.random.normal(ks[1], (4 * hidden_dim, hidden_dim), jnp.float32),
        "b_ih": scale * jax.random.normal(ks[2], (4 * hidden_dim,), jnp.float32),
        "b_hh": scale * jax.random.normal(ks[3], (4 * hidden_dim,), jnp.float32),
        "w1": scale * jax.random.normal(ks[4], (value_hidden, hidden_dim), jnp.float32),
        "b1": scale * jax.random.normal(ks[5], (value_hidden,), jnp.float32),
        "w2": scale * jax.random.normal(ks[6], (1, value_hidden), jnp.float32),
        "b2": scale * jax.random.normal(ks[7], (1,), jnp.float32),
    }


def prepare_kernel_params(raw, hidden_dim, value_hidden):
    """Pre-transpose / pack / rescale / bf16-cast the raw weights for the kernel layout."""
    H = hidden_dim
    Hp = _round_up(H, 32)          # 4*Hp is a whole number of 128-lane columns
    G = 4 * Hp

    def pack_gates(w):             # (rows, 4H) -> (rows, 4Hp); gate g -> cols [g*Hp, g*Hp+H)
        out = jnp.zeros((w.shape[0], G), w.dtype)
        for g in range(4):
            out = out.at[:, g * Hp:g * Hp + H].set(w[:, g * H:(g + 1) * H])
        return out

    # Fold the sigmoid-as-tanh rescale into the weights: halve the i/f/o pre-activations
    # so the kernel recovers sigmoid(z) = 0.5*tanh(z/2) + 0.5 from one packed tanh.
    gate_scale = jnp.concatenate([jnp.full((Hp,), 0.5), jnp.full((Hp,), 0.5),
                                  jnp.ones((Hp,)), jnp.full((Hp,), 0.5)]).astype(jnp.float32)

    wx = pack_gates(jnp.transpose(raw["w_ih"])) * gate_scale              # (D, 4Hp)
    wh = pack_gates(jnp.transpose(raw["w_hh"])) * gate_scale              # (H, 4Hp)
    wh = jnp.zeros((Hp, G), jnp.float32).at[:H, :].set(wh)                # pad rows -> (Hp, 4Hp)
    b = pack_gates((raw["b_ih"] + raw["b_hh"]).reshape(1, 4 * H)) * gate_scale
    w1 = jnp.zeros((Hp, value_hidden), jnp.float32).at[:H, :].set(
        jnp.transpose(raw["w1"]))                                         # (Hp, VH)

    # Pad-lane invariant (when Hp > H): wx/wh/b pad columns and wh/w1 pad rows are exactly
    # zero, so padded lanes of c and h stay exactly zero through the recurrence.
    return {
        "wx": wx.astype(jnp.bfloat16),
        "wh": wh.astype(jnp.bfloat16),
        "b": b,                                                           # f32
        "w1": w1.astype(jnp.bfloat16),
        "b1": raw["b1"].reshape(1, value_hidden),
        "w2": raw["w2"].reshape(1, value_hidden),                         # row for VPU reduce
        "b2": raw["b2"].reshape(1, 1),
    }


# ----------------------------------------------------------------------------- reference
def critic_reference(s, raw):
    """Pure-JAX f32 reference with PyTorch nn.LSTM semantics."""
    B, T, D = s.shape
    H = raw["w_hh"].shape[1]
    wx, wh = jnp.transpose(raw["w_ih"]), jnp.transpose(raw["w_hh"])
    b = (raw["b_ih"] + raw["b_hh"]).reshape(1, 4 * H)
    h = jnp.zeros((B, H), jnp.float32)
    c = jnp.zeros((B, H), jnp.float32)
    for t in range(T):
        gates = s[:, t, :] @ wx + h @ wh + b
        i_g = jax.nn.sigmoid(gates[:, 0 * H:1 * H])
        f_g = jax.nn.sigmoid(gates[:, 1 * H:2 * H])
        g_g = jnp.tanh(gates[:, 2 * H:3 * H])
        o_g = jax.nn.sigmoid(gates[:, 3 * H:4 * H])
        c = f_g * c + i_g * g_g
        h = o_g * jnp.tanh(c)
    hid = jnp.maximum(h @ jnp.transpose(raw["w1"]) + raw["b1"], 0.0)
    return hid @ jnp.transpose(raw["w2"]) + raw["b2"].reshape(1, 1)


if __name__ == "__main__":
    B, T, D = 16, 8, 32          # batch, seq len, input feature dim
    H, VH = 32, 32               # LSTM hidden dim, value-head hidden dim

    key = jax.random.PRNGKey(0)
    k_x, k_p = jax.random.split(key)
    s = jax.random.normal(k_x, (B, T, D), jnp.float32)

    raw = init_params(k_p, D, H, VH)
    kp = prepare_kernel_params(raw, H, VH)

    # Default tiling picks tb=8 here -> grid=(2,), exercising the multi-grid "parallel"
    # path (output index_map + padded-lane invariant) and not just a grid of 1.
    value = jax.block_until_ready(critic_forward(s, kp))
    ref = critic_reference(s, raw)

    assert value.shape == (B, 1)
    assert jnp.allclose(value, ref, rtol=2e-2, atol=2e-2), (value, ref)

    print("KERNEL_OK")
</pallas_src>

<mosaic_0001>
module attributes {stable_mosaic.version = 11 : i64} {
  func.func @critic_kernel(%arg0: i32, %arg1: memref<64x32xbf16, #tpu.memory_space<vmem>>, %arg2: memref<32x128xbf16, #tpu.memory_space<vmem>>, %arg3: memref<32x128xbf16, #tpu.memory_space<vmem>>, %arg4: memref<1x128xf32, #tpu.memory_space<vmem>>, %arg5: memref<32x32xbf16, #tpu.memory_space<vmem>>, %arg6: memref<1x32xf32, #tpu.memory_space<vmem>>, %arg7: memref<1x32xf32, #tpu.memory_space<vmem>>, %arg8: memref<1x1xf32, #tpu.memory_space<vmem>>, %arg9: memref<8x1xf32, #tpu.memory_space<vmem>>, %arg10: memref<64x128xf32, #tpu.memory_space<vmem>>) attributes {dimension_semantics = [#tpu.dimension_semantics<parallel>], iteration_bounds = array<i64: 2>, scalar_prefetch = 0 : i64, scratch_operands = 1 : i64, tpu.core_type = #tpu.core_type<tc>, window_params = [{transform_indices = @transform_0, window_bounds = array<i64: 64, 32>}, {pipeline_mode = #tpu.pipeline_mode<synchronous>, transform_indices = @transform_1, window_bounds = array<i64: 32, 128>}, {pipeline_mode = #tpu.pipeline_mode<synchronous>, transform_indices = @transform_2, window_bounds = array<i64: 32, 128>}, {pipeline_mode = #tpu.pipeline_mode<synchronous>, transform_indices = @transform_3, window_bounds = array<i64: 1, 128>}, {pipeline_mode = #tpu.pipeline_mode<synchronous>, transform_indices = @transform_4, window_bounds = array<i64: 32, 32>}, {pipeline_mode = #tpu.pipeline_mode<synchronous>, transform_indices = @transform_5, window_bounds = array<i64: 1, 32>}, {pipeline_mode = #tpu.pipeline_mode<synchronous>, transform_indices = @transform_6, window_bounds = array<i64: 1, 32>}, {pipeline_mode = #tpu.pipeline_mode<synchronous>, transform_indices = @transform_7, window_bounds = array<i64: 1, 1>}, {transform_indices = @transform_8, window_bounds = array<i64: 8, 1>}]} {
    %c0 = arith.constant 0 : index
    %c0_0 = arith.constant 0 : index
    %0 = vector.load %arg1[%c0, %c0_0] : memref<64x32xbf16, #tpu.memory_space<vmem>>, vector<64x32xbf16>
    %c0_1 = arith.constant 0 : index
    %c0_2 = arith.constant 0 : index
    %1 = vector.load %arg2[%c0_1, %c0_2] : memref<32x128xbf16, #tpu.memory_space<vmem>>, vector<32x128xbf16>
    %cst = arith.constant dense<0.000000e+00> : vector<64x128xf32>
    %2 = tpu.matmul %0, %1, %cst {dimension_numbers = #tpu.dot_dimension_numbers<[1], [0], [0], [1], [0, 0, 1, 1], [], []>} : vector<64x32xbf16>, vector<32x128xbf16>, vector<64x128xf32> -> vector<64x128xf32>
    %c0_3 = arith.constant 0 : index
    %c0_4 = arith.constant 0 : index
    %3 = vector.load %arg4[%c0_3, %c0_4] : memref<1x128xf32, #tpu.memory_space<vmem>>, vector<1x128xf32>
    %4 = vector.broadcast %3 : vector<1x128xf32> to vector<64x128xf32>
    %5 = arith.addf %2, %4 : vector<64x128xf32>
    %c0_5 = arith.constant 0 : index
    %c0_6 = arith.constant 0 : index
    %6 = vector.load %arg10[%c0_5, %c0_6] : memref<64x128xf32, #tpu.memory_space<vmem>>, vector<64x128xf32>
    tpu.vector_store %arg10[%c0_5, %c0_6], %5 {strides = array<i32>} : memref<64x128xf32, #tpu.memory_space<vmem>>, vector<64x128xf32>,
    %c0_7 = arith.constant 0 : index
    %c0_8 = arith.constant 0 : index
    %7 = vector.load %arg3[%c0_7, %c0_8] : memref<32x128xbf16, #tpu.memory_space<vmem>>, vector<32x128xbf16>
    %cst_9 = arith.constant 0.000000e+00 : f32
    %8 = vector.broadcast %cst_9 : f32 to vector<8x32xf32>
    %cst_10 = arith.constant 0.000000e+00 : f32
    %9 = vector.broadcast %cst_10 : f32 to vector<8x32xf32>
    %c0_11 = arith.constant 0 : index
    %c0_12 = arith.constant 0 : index
    %10 = tpu.strided_load %arg10[%c0_11, %c0_12] {strides = array<i32: 8, 1>} : memref<64x128xf32, #tpu.memory_space<vmem>>, vector<8x128xf32>
    %11 = arith.truncf %8 : vector<8x32xf32> to vector<8x32xbf16>
    %cst_13 = arith.constant dense<0.000000e+00> : vector<8x128xf32>
    %12 = tpu.matmul %11, %7, %cst_13 {dimension_numbers = #tpu.dot_dimension_numbers<[1], [0], [0], [1], [0, 0, 1, 1], [], []>} : vector<8x32xbf16>, vector<32x128xbf16>, vector<8x128xf32> -> vector<8x128xf32>
    %13 = arith.addf %10, %12 : vector<8x128xf32>
    %14 = math.tanh %13 : vector<8x128xf32>
    %15 = vector.extract_strided_slice %14 {offsets = [0, 0], sizes = [8, 32], strides = [1, 1]} : vector<8x128xf32> to vector<8x32xf32>
    %cst_14 = arith.constant 5.000000e-01 : f32
    %16 = vector.broadcast %cst_14 : f32 to vector<8x32xf32>
    %17 = arith.mulf %16, %15 : vector<8x32xf32>
    %cst_15 = arith.constant 5.000000e-01 : f32
    %18 = vector.broadcast %cst_15 : f32 to vector<8x32xf32>
    %19 = arith.addf %17, %18 : vector<8x32xf32>
    %20 = vector.extract_strided_slice %14 {offsets = [0, 32], sizes = [8, 32], strides = [1, 1]} : vector<8x128xf32> to vector<8x32xf32>
    %cst_16 = arith.constant 5.000000e-01 : f32
    %21 = vector.broadcast %cst_16 : f32 to vector<8x32xf32>
    %22 = arith.mulf %21, %20 : vector<8x32xf32>
    %cst_17 = arith.constant 5.000000e-01 : f32
    %23 = vector.broadcast %cst_17 : f32 to vector<8x32xf32>
    %24 = arith.addf %22, %23 : vector<8x32xf32>
    %25 = vector.extract_strided_slice %14 {offsets = [0, 64], sizes = [8, 32], strides = [1, 1]} : vector<8x128xf32> to vector<8x32xf32>
    %26 = vector.extract_strided_slice %14 {offsets = [0, 96], sizes = [8, 32], strides = [1, 1]} : vector<8x128xf32> to vector<8x32xf32>
    %cst_18 = arith.constant 5.000000e-01 : f32
    %27 = vector.broadcast %cst_18 : f32 to vector<8x32xf32>
    %28 = arith.mulf %27, %26 : vector<8x32xf32>
    %cst_19 = arith.constant 5.000000e-01 : f32
    %29 = vector.broadcast %cst_19 : f32 to vector<8x32xf32>
    %30 = arith.addf %28, %29 : vector<8x32xf32>
    %31 = arith.mulf %24, %9 : vector<8x32xf32>
    %32 = arith.mulf %19, %25 : vector<8x32xf32>
    %33 = arith.addf %31, %32 : vector<8x32xf32>
    %34 = math.tanh %33 : vector<8x32xf32>
    %35 = arith.mulf %30, %34 : vector<8x32xf32>
    %c1 = arith.constant 1 : index
    %c0_20 = arith.constant 0 : index
    %36 = tpu.strided_load %arg10[%c1, %c0_20] {strides = array<i32: 8, 1>} : memref<64x128xf32, #tpu.memory_space<vmem>>, vector<8x128xf32>
    %37 = arith.truncf %35 : vector<8x32xf32> to vector<8x32xbf16>
    %cst_21 = arith.constant dense<0.000000e+00> : vector<8x128xf32>
    %38 = tpu.matmul %37, %7, %cst_21 {dimension_numbers = #tpu.dot_dimension_numbers<[1], [0], [0], [1], [0, 0, 1, 1], [], []>} : vector<8x32xbf16>, vector<32x128xbf16>, vector<8x128xf32> -> vector<8x128xf32>
    %39 = arith.addf %36, %38 : vector<8x128xf32>
    %40 = math.tanh %39 : vector<8x128xf32>
    %41 = vector.extract_strided_slice %40 {offsets = [0, 0], sizes = [8, 32], strides = [1, 1]} : vector<8x128xf32> to vector<8x32xf32>
    %cst_22 = arith.constant 5.000000e-01 : f32
    %42 = vector.broadcast %cst_22 : f32 to vector<8x32xf32>
    %43 = arith.mulf %42, %41 : vector<8x32xf32>
    %cst_23 = arith.constant 5.000000e-01 : f32
    %44 = vector.broadcast %cst_23 : f32 to vector<8x32xf32>
    %45 = arith.addf %43, %44 : vector<8x32xf32>
    %46 = vector.extract_strided_slice %40 {offsets = [0, 32], sizes = [8, 32], strides = [1, 1]} : vector<8x128xf32> to vector<8x32xf32>
    %cst_24 = arith.constant 5.000000e-01 : f32
    %47 = vector.broadcast %cst_24 : f32 to vector<8x32xf32>
    %48 = arith.mulf %47, %46 : vector<8x32xf32>
    %cst_25 = arith.constant 5.000000e-01 : f32
    %49 = vector.broadcast %cst_25 : f32 to vector<8x32xf32>
    %50 = arith.addf %48, %49 : vector<8x32xf32>
    %51 = vector.extract_strided_slice %40 {offsets = [0, 64], sizes = [8, 32], strides = [1, 1]} : vector<8x128xf32> to vector<8x32xf32>
    %52 = vector.extract_strided_slice %40 {offsets = [0, 96], sizes = [8, 32], strides = [1, 1]} : vector<8x128xf32> to vector<8x32xf32>
    %cst_26 = arith.constant 5.000000e-01 : f32
    %53 = vector.broadcast %cst_26 : f32 to vector<8x32xf32>
    %54 = arith.mulf %53, %52 : vector<8x32xf32>
    %cst_27 = arith.constant 5.000000e-01 : f32
    %55 = vector.broadcast %cst_27 : f32 to vector<8x32xf32>
    %56 = arith.addf %54, %55 : vector<8x32xf32>
    %57 = arith.mulf %50, %33 : vector<8x32xf32>
    %58 = arith.mulf %45, %51 : vector<8x32xf32>
    %59 = arith.addf %57, %58 : vector<8x32xf32>
    %60 = math.tanh %59 : vector<8x32xf32>
    %61 = arith.mulf %56, %60 : vector<8x32xf32>
    %c2 = arith.constant 2 : index
    %c0_28 = arith.constant 0 : index
    %62 = tpu.strided_load %arg10[%c2, %c0_28] {strides = array<i32: 8, 1>} : memref<64x128xf32, #tpu.memory_space<vmem>>, vector<8x128xf32>
    %63 = arith.truncf %61 : vector<8x32xf32> to vector<8x32xbf16>
    %cst_29 = arith.constant dense<0.000000e+00> : vector<8x128xf32>
    %64 = tpu.matmul %63, %7, %cst_29 {dimension_numbers = #tpu.dot_dimension_numbers<[1], [0], [0], [1], [0, 0, 1, 1], [], []>} : vector<8x32xbf16>, vector<32x128xbf16>, vector<8x128xf32> -> vector<8x128xf32>
    %65 = arith.addf %62, %64 : vector<8x128xf32>
    %66 = math.tanh %65 : vector<8x128xf32>
    %67 = vector.extract_strided_slice %66 {offsets = [0, 0], sizes = [8, 32], strides = [1, 1]} : vector<8x128xf32> to vector<8x32xf32>
    %cst_30 = arith.constant 5.000000e-01 : f32
    %68 = vector.broadcast %cst_30 : f32 to vector<8x32xf32>
    %69 = arith.mulf %68, %67 : vector<8x32xf32>
    %cst_31 = arith.constant 5.000000e-01 : f32
    %70 = vector.broadcast %cst_31 : f32 to vector<8x32xf32>
    %71 = arith.addf %69, %70 : vector<8x32xf32>
    %72 = vector.extract_strided_slice %66 {offsets = [0, 32], sizes = [8, 32], strides = [1, 1]} : vector<8x128xf32> to vector<8x32xf32>
    %cst_32 = arith.constant 5.000000e-01 : f32
    %73 = vector.broadcast %cst_32 : f32 to vector<8x32xf32>
    %74 = arith.mulf %73, %72 : vector<8x32xf32>
    %cst_33 = arith.constant 5.000000e-01 : f32
    %75 = vector.broadcast %cst_33 : f32 to vector<8x32xf32>
    %76 = arith.addf %74, %75 : vector<8x32xf32>
    %77 = vector.extract_strided_slice %66 {offsets = [0, 64], sizes = [8, 32], strides = [1, 1]} : vector<8x128xf32> to vector<8x32xf32>
    %78 = vector.extract_strided_slice %66 {offsets = [0, 96], sizes = [8, 32], strides = [1, 1]} : vector<8x128xf32> to vector<8x32xf32>
    %cst_34 = arith.constant 5.000000e-01 : f32
    %79 = vector.broadcast %cst_34 : f32 to vector<8x32xf32>
    %80 = arith.mulf %79, %78 : vector<8x32xf32>
    %cst_35 = arith.constant 5.000000e-01 : f32
    %81 = vector.broadcast %cst_35 : f32 to vector<8x32xf32>
    %82 = arith.addf %80, %81 : vector<8x32xf32>
    %83 = arith.mulf %76, %59 : vector<8x32xf32>
    %84 = arith.mulf %71, %77 : vector<8x32xf32>
    %85 = arith.addf %83, %84 : vector<8x32xf32>
    %86 = math.tanh %85 : vector<8x32xf32>
    %87 = arith.mulf %82, %86 : vector<8x32xf32>
    %c3 = arith.constant 3 : index
    %c0_36 = arith.constant 0 : index
    %88 = tpu.strided_load %arg10[%c3, %c0_36] {strides = array<i32: 8, 1>} : memref<64x128xf32, #tpu.memory_space<vmem>>, vector<8x128xf32>
    %89 = arith.truncf %87 : vector<8x32xf32> to vector<8x32xbf16>
    %cst_37 = arith.constant dense<0.000000e+00> : vector<8x128xf32>
    %90 = tpu.matmul %89, %7, %cst_37 {dimension_numbers = #tpu.dot_dimension_numbers<[1], [0], [0], [1], [0, 0, 1, 1], [], []>} : vector<8x32xbf16>, vector<32x128xbf16>, vector<8x128xf32> -> vector<8x128xf32>
    %91 = arith.addf %88, %90 : vector<8x128xf32>
    %92 = math.tanh %91 : vector<8x128xf32>
    %93 = vector.extract_strided_slice %92 {offsets = [0, 0], sizes = [8, 32], strides = [1, 1]} : vector<8x128xf32> to vector<8x32xf32>
    %cst_38 = arith.constant 5.000000e-01 : f32
    %94 = vector.broadcast %cst_38 : f32 to vector<8x32xf32>
    %95 = arith.mulf %94, %93 : vector<8x32xf32>
    %cst_39 = arith.constant 5.000000e-01 : f32
    %96 = vector.broadcast %cst_39 : f32 to vector<8x32xf32>
    %97 = arith.addf %95, %96 : vector<8x32xf32>
    %98 = vector.extract_strided_slice %92 {offsets = [0, 32], sizes = [8, 32], strides = [1, 1]} : vector<8x128xf32> to vector<8x32xf32>
    %cst_40 = arith.constant 5.000000e-01 : f32
    %99 = vector.broadcast %cst_40 : f32 to vector<8x32xf32>
    %100 = arith.mulf %99, %98 : vector<8x32xf32>
    %cst_41 = arith.constant 5.000000e-01 : f32
    %101 = vector.broadcast %cst_41 : f32 to vector<8x32xf32>
    %102 = arith.addf %100, %101 : vector<8x32xf32>
    %103 = vector.extract_strided_slice %92 {offsets = [0, 64], sizes = [8, 32], strides = [1, 1]} : vector<8x128xf32> to vector<8x32xf32>
    %104 = vector.extract_strided_slice %92 {offsets = [0, 96], sizes = [8, 32], strides = [1, 1]} : vector<8x128xf32> to vector<8x32xf32>
    %cst_42 = arith.constant 5.000000e-01 : f32
    %105 = vector.broadcast %cst_42 : f32 to vector<8x32xf32>
    %106 = arith.mulf %105, %104 : vector<8x32xf32>
    %cst_43 = arith.constant 5.000000e-01 : f32
    %107 = vector.broadcast %cst_43 : f32 to vector<8x32xf32>
    %108 = arith.addf %106, %107 : vector<8x32xf32>
    %109 = arith.mulf %102, %85 : vector<8x32xf32>
    %110 = arith.mulf %97, %103 : vector<8x32xf32>
    %111 = arith.addf %109, %110 : vector<8x32xf32>
    %112 = math.tanh %111 : vector<8x32xf32>
    %113 = arith.mulf %108, %112 : vector<8x32xf32>
    %c4 = arith.constant 4 : index
    %c0_44 = arith.constant 0 : index
    %114 = tpu.strided_load %arg10[%c4, %c0_44] {strides = array<i32: 8, 1>} : memref<64x128xf32, #tpu.memory_space<vmem>>, vector<8x128xf32>
    %115 = arith.truncf %113 : vector<8x32xf32> to vector<8x32xbf16>
    %cst_45 = arith.constant dense<0.000000e+00> : vector<8x128xf32>
    %116 = tpu.matmul %115, %7, %cst_45 {dimension_numbers = #tpu.dot_dimension_numbers<[1], [0], [0], [1], [0, 0, 1, 1], [], []>} : vector<8x32xbf16>, vector<32x128xbf16>, vector<8x128xf32> -> vector<8x128xf32>
    %117 = arith.addf %114, %116 : vector<8x128xf32>
    %118 = math.tanh %117 : vector<8x128xf32>
    %119 = vector.extract_strided_slice %118 {offsets = [0, 0], sizes = [8, 32], strides = [1, 1]} : vector<8x128xf32> to vector<8x32xf32>
    %cst_46 = arith.constant 5.000000e-01 : f32
    %120 = vector.broadcast %cst_46 : f32 to vector<8x32xf32>
    %121 = arith.mulf %120, %119 : vector<8x32xf32>
    %cst_47 = arith.constant 5.000000e-01 : f32
    %122 = vector.broadcast %cst_47 : f32 to vector<8x32xf32>
    %123 = arith.addf %121, %122 : vector<8x32xf32>
    %124 = vector.extract_strided_slice %118 {offsets = [0, 32], sizes = [8, 32], strides = [1, 1]} : vector<8x128xf32> to vector<8x32xf32>
    %cst_48 = arith.constant 5.000000e-01 : f32
    %125 = vector.broadcast %cst_48 : f32 to vector<8x32xf32>
    %126 = arith.mulf %125, %124 : vector<8x32xf32>
    %cst_49 = arith.constant 5.000000e-01 : f32
    %127 = vector.broadcast %cst_49 : f32 to vector<8x32xf32>
    %128 = arith.addf %126, %127 : vector<8x32xf32>
    %129 = vector.extract_strided_slice %118 {offsets = [0, 64], sizes = [8, 32], strides = [1, 1]} : vector<8x128xf32> to vector<8x32xf32>
    %130 = vector.extract_strided_slice %118 {offsets = [0, 96], sizes = [8, 32], strides = [1, 1]} : vector<8x128xf32> to vector<8x32xf32>
    %cst_50 = arith.constant 5.000000e-01 : f32
    %131 = vector.broadcast %cst_50 : f32 to vector<8x32xf32>
    %132 = arith.mulf %131, %130 : vector<8x32xf32>
    %cst_51 = arith.constant 5.000000e-01 : f32
    %133 = vector.broadcast %cst_51 : f32 to vector<8x32xf32>
    %134 = arith.addf %132, %133 : vector<8x32xf32>
    %135 = arith.mulf %128, %111 : vector<8x32xf32>
    %136 = arith.mulf %123, %129 : vector<8x32xf32>
    %137 = arith.addf %135, %136 : vector<8x32xf32>
    %138 = math.tanh %137 : vector<8x32xf32>
    %139 = arith.mulf %134, %138 : vector<8x32xf32>
    %c5 = arith.constant 5 : index
    %c0_52 = arith.constant 0 : index
    %140 = tpu.strided_load %arg10[%c5, %c0_52] {strides = array<i32: 8, 1>} : memref<64x128xf32, #tpu.memory_space<vmem>>, vector<8x128xf32>
    %141 = arith.truncf %139 : vector<8x32xf32> to vector<8x32xbf16>
    %cst_53 = arith.constant dense<0.000000e+00> : vector<8x128xf32>
    %142 = tpu.matmul %141, %7, %cst_53 {dimension_numbers = #tpu.dot_dimension_numbers<[1], [0], [0], [1], [0, 0, 1, 1], [], []>} : vector<8x32xbf16>, vector<32x128xbf16>, vector<8x128xf32> -> vector<8x128xf32>
    %143 = arith.addf %140, %142 : vector<8x128xf32>
    %144 = math.tanh %143 : vector<8x128xf32>
    %145 = vector.extract_strided_slice %144 {offsets = [0, 0], sizes = [8, 32], strides = [1, 1]} : vector<8x128xf32> to vector<8x32xf32>
    %cst_54 = arith.constant 5.000000e-01 : f32
    %146 = vector.broadcast %cst_54 : f32 to vector<8x32xf32>
    %147 = arith.mulf %146, %145 : vector<8x32xf32>
    %cst_55 = arith.constant 5.000000e-01 : f32
    %148 = vector.broadcast %cst_55 : f32 to vector<8x32xf32>
    %149 = arith.addf %147, %148 : vector<8x32xf32>
    %150 = vector.extract_strided_slice %144 {offsets = [0, 32], sizes = [8, 32], strides = [1, 1]} : vector<8x128xf32> to vector<8x32xf32>
    %cst_56 = arith.constant 5.000000e-01 : f32
    %151 = vector.broadcast %cst_56 : f32 to vector<8x32xf32>
    %152 = arith.mulf %151, %150 : vector<8x32xf32>
    %cst_57 = arith.constant 5.000000e-01 : f32
    %153 = vector.broadcast %cst_57 : f32 to vector<8x32xf32>
    %154 = arith.addf %152, %153 : vector<8x32xf32>
    %155 = vector.extract_strided_slice %144 {offsets = [0, 64], sizes = [8, 32], strides = [1, 1]} : vector<8x128xf32> to vector<8x32xf32>
    %156 = vector.extract_strided_slice %144 {offsets = [0, 96], sizes = [8, 32], strides = [1, 1]} : vector<8x128xf32> to vector<8x32xf32>
    %cst_58 = arith.constant 5.000000e-01 : f32
    %157 = vector.broadcast %cst_58 : f32 to vector<8x32xf32>
    %158 = arith.mulf %157, %156 : vector<8x32xf32>
    %cst_59 = arith.constant 5.000000e-01 : f32
    %159 = vector.broadcast %cst_59 : f32 to vector<8x32xf32>
    %160 = arith.addf %158, %159 : vector<8x32xf32>
    %161 = arith.mulf %154, %137 : vector<8x32xf32>
    %162 = arith.mulf %149, %155 : vector<8x32xf32>
    %163 = arith.addf %161, %162 : vector<8x32xf32>
    %164 = math.tanh %163 : vector<8x32xf32>
    %165 = arith.mulf %160, %164 : vector<8x32xf32>
    %c6 = arith.constant 6 : index
    %c0_60 = arith.constant 0 : index
    %166 = tpu.strided_load %arg10[%c6, %c0_60] {strides = array<i32: 8, 1>} : memref<64x128xf32, #tpu.memory_space<vmem>>, vector<8x128xf32>
    %167 = arith.truncf %165 : vector<8x32xf32> to vector<8x32xbf16>
    %cst_61 = arith.constant dense<0.000000e+00> : vector<8x128xf32>
    %168 = tpu.matmul %167, %7, %cst_61 {dimension_numbers = #tpu.dot_dimension_numbers<[1], [0], [0], [1], [0, 0, 1, 1], [], []>} : vector<8x32xbf16>, vector<32x128xbf16>, vector<8x128xf32> -> vector<8x128xf32>
    %169 = arith.addf %166, %168 : vector<8x128xf32>
    %170 = math.tanh %169 : vector<8x128xf32>
    %171 = vector.extract_strided_slice %170 {offsets = [0, 0], sizes = [8, 32], strides = [1, 1]} : vector<8x128xf32> to vector<8x32xf32>
    %cst_62 = arith.constant 5.000000e-01 : f32
    %172 = vector.broadcast %cst_62 : f32 to vector<8x32xf32>
    %173 = arith.mulf %172, %171 : vector<8x32xf32>
    %cst_63 = arith.constant 5.000000e-01 : f32
    %174 = vector.broadcast %cst_63 : f32 to vector<8x32xf32>
    %175 = arith.addf %173, %174 : vector<8x32xf32>
    %176 = vector.extract_strided_slice %170 {offsets = [0, 32], sizes = [8, 32], strides = [1, 1]} : vector<8x128xf32> to vector<8x32xf32>
    %cst_64 = arith.constant 5.000000e-01 : f32
    %177 = vector.broadcast %cst_64 : f32 to vector<8x32xf32>
    %178 = arith.mulf %177, %176 : vector<8x32xf32>
    %cst_65 = arith.constant 5.000000e-01 : f32
    %179 = vector.broadcast %cst_65 : f32 to vector<8x32xf32>
    %180 = arith.addf %178, %179 : vector<8x32xf32>
    %181 = vector.extract_strided_slice %170 {offsets = [0, 64], sizes = [8, 32], strides = [1, 1]} : vector<8x128xf32> to vector<8x32xf32>
    %182 = vector.extract_strided_slice %170 {offsets = [0, 96], sizes = [8, 32], strides = [1, 1]} : vector<8x128xf32> to vector<8x32xf32>
    %cst_66 = arith.constant 5.000000e-01 : f32
    %183 = vector.broadcast %cst_66 : f32 to vector<8x32xf32>
    %184 = arith.mulf %183, %182 : vector<8x32xf32>
    %cst_67 = arith.constant 5.000000e-01 : f32
    %185 = vector.broadcast %cst_67 : f32 to vector<8x32xf32>
    %186 = arith.addf %184, %185 : vector<8x32xf32>
    %187 = arith.mulf %180, %163 : vector<8x32xf32>
    %188 = arith.mulf %175, %181 : vector<8x32xf32>
    %189 = arith.addf %187, %188 : vector<8x32xf32>
    %190 = math.tanh %189 : vector<8x32xf32>
    %191 = arith.mulf %186, %190 : vector<8x32xf32>
    %c7 = arith.constant 7 : index
    %c0_68 = arith.constant 0 : index
    %192 = tpu.strided_load %arg10[%c7, %c0_68] {strides = array<i32: 8, 1>} : memref<64x128xf32, #tpu.memory_space<vmem>>, vector<8x128xf32>
    %193 = arith.truncf %191 : vector<8x32xf32> to vector<8x32xbf16>
    %cst_69 = arith.constant dense<0.000000e+00> : vector<8x128xf32>
    %194 = tpu.matmul %193, %7, %cst_69 {dimension_numbers = #tpu.dot_dimension_numbers<[1], [0], [0], [1], [0, 0, 1, 1], [], []>} : vector<8x32xbf16>, vector<32x128xbf16>, vector<8x128xf32> -> vector<8x128xf32>
    %195 = arith.addf %192, %194 : vector<8x128xf32>
    %196 = math.tanh %195 : vector<8x128xf32>
    %197 = vector.extract_strided_slice %196 {offsets = [0, 0], sizes = [8, 32], strides = [1, 1]} : vector<8x128xf32> to vector<8x32xf32>
    %cst_70 = arith.constant 5.000000e-01 : f32
    %198 = vector.broadcast %cst_70 : f32 to vector<8x32xf32>
    %199 = arith.mulf %198, %197 : vector<8x32xf32>
    %cst_71 = arith.constant 5.000000e-01 : f32
    %200 = vector.broadcast %cst_71 : f32 to vector<8x32xf32>
    %201 = arith.addf %199, %200 : vector<8x32xf32>
    %202 = vector.extract_strided_slice %196 {offsets = [0, 32], sizes = [8, 32], strides = [1, 1]} : vector<8x128xf32> to vector<8x32xf32>
    %cst_72 = arith.constant 5.000000e-01 : f32
    %203 = vector.broadcast %cst_72 : f32 to vector<8x32xf32>
    %204 = arith.mulf %203, %202 : vector<8x32xf32>
    %cst_73 = arith.constant 5.000000e-01 : f32
    %205 = vector.broadcast %cst_73 : f32 to vector<8x32xf32>
    %206 = arith.addf %204, %205 : vector<8x32xf32>
    %207 = vector.extract_strided_slice %196 {offsets = [0, 64], sizes = [8, 32], strides = [1, 1]} : vector<8x128xf32> to vector<8x32xf32>
    %208 = vector.extract_strided_slice %196 {offsets = [0, 96], sizes = [8, 32], strides = [1, 1]} : vector<8x128xf32> to vector<8x32xf32>
    %cst_74 = arith.constant 5.000000e-01 : f32
    %209 = vector.broadcast %cst_74 : f32 to vector<8x32xf32>
    %210 = arith.mulf %209, %208 : vector<8x32xf32>
    %cst_75 = arith.constant 5.000000e-01 : f32
    %211 = vector.broadcast %cst_75 : f32 to vector<8x32xf32>
    %212 = arith.addf %210, %211 : vector<8x32xf32>
    %213 = arith.mulf %206, %189 : vector<8x32xf32>
    %214 = arith.mulf %201, %207 : vector<8x32xf32>
    %215 = arith.addf %213, %214 : vector<8x32xf32>
    %216 = math.tanh %215 : vector<8x32xf32>
    %217 = arith.mulf %212, %216 : vector<8x32xf32>
    %218 = arith.truncf %217 : vector<8x32xf32> to vector<8x32xbf16>
    %c0_76 = arith.constant 0 : index
    %c0_77 = arith.constant 0 : index
    %219 = vector.load %arg5[%c0_76, %c0_77] : memref<32x32xbf16, #tpu.memory_space<vmem>>, vector<32x32xbf16>
    %cst_78 = arith.constant dense<0.000000e+00> : vector<8x32xf32>
    %220 = tpu.matmul %218, %219, %cst_78 {dimension_numbers = #tpu.dot_dimension_numbers<[1], [0], [0], [1], [0, 0, 1, 1], [], []>} : vector<8x32xbf16>, vector<32x32xbf16>, vector<8x32xf32> -> vector<8x32xf32>
    %c0_79 = arith.constant 0 : index
    %c0_80 = arith.constant 0 : index
    %221 = vector.load %arg6[%c0_79, %c0_80] : memref<1x32xf32, #tpu.memory_space<vmem>>, vector<1x32xf32>
    %222 = vector.broadcast %221 : vector<1x32xf32> to vector<8x32xf32>
    %223 = arith.addf %220, %222 : vector<8x32xf32>
    %cst_81 = arith.constant 0.000000e+00 : f32
    %224 = vector.broadcast %cst_81 : f32 to vector<8x32xf32>
    %225 = arith.maximumf %223, %224 : vector<8x32xf32>
    %c0_82 = arith.constant 0 : index
    %c0_83 = arith.constant 0 : index
    %226 = vector.load %arg7[%c0_82, %c0_83] : memref<1x32xf32, #tpu.memory_space<vmem>>, vector<1x32xf32>
    %227 = vector.broadcast %226 : vector<1x32xf32> to vector<8x32xf32>
    %228 = arith.mulf %225, %227 : vector<8x32xf32>
    %cst_84 = arith.constant dense<0.000000e+00> : vector<8xf32>
    %229 = vector.multi_reduction <add>, %228, %cst_84 [1] : vector<8x32xf32> to vector<8xf32>
    %230 = vector.shape_cast %229 : vector<8xf32> to vector<8x1xf32>
    %c0_85 = arith.constant 0 : index
    %c0_86 = arith.constant 0 : index
    %231 = vector.load %arg8[%c0_85, %c0_86] : memref<1x1xf32, #tpu.memory_space<vmem>>, vector<1x1xf32>
    %232 = vector.broadcast %231 : vector<1x1xf32> to vector<8x1xf32>
    %233 = arith.addf %230, %232 : vector<8x1xf32>
    %c0_87 = arith.constant 0 : index
    %c0_88 = arith.constant 0 : index
    %234 = vector.load %arg9[%c0_87, %c0_88] : memref<8x1xf32, #tpu.memory_space<vmem>>, vector<8x1xf32>
    tpu.vector_store %arg9[%c0_87, %c0_88], %233 {strides = array<i32>} : memref<8x1xf32, #tpu.memory_space<vmem>>, vector<8x1xf32>,
    return
  }
  func.func @transform_0(%arg0: i32) -> (i32, i32) {
    %c0_i32 = arith.constant 0 : i32
    %c0_i32_0 = arith.constant 0 : i32
    return %arg0, %c0_i32 : i32, i32
  }
  func.func @transform_1(%arg0: i32) -> (i32, i32) {
    %c0_i32 = arith.constant 0 : i32
    %c0_i32_0 = arith.constant 0 : i32
    %c0_i32_1 = arith.constant 0 : i32
    return %c0_i32, %c0_i32_0 : i32, i32
  }
  func.func @transform_2(%arg0: i32) -> (i32, i32) {
    %c0_i32 = arith.constant 0 : i32
    %c0_i32_0 = arith.constant 0 : i32
    %c0_i32_1 = arith.constant 0 : i32
    return %c0_i32, %c0_i32_0 : i32, i32
  }
  func.func @transform_3(%arg0: i32) -> (i32, i32) {
    %c0_i32 = arith.constant 0 : i32
    %c0_i32_0 = arith.constant 0 : i32
    %c0_i32_1 = arith.constant 0 : i32
    return %c0_i32, %c0_i32_0 : i32, i32
  }
  func.func @transform_4(%arg0: i32) -> (i32, i32) {
    %c0_i32 = arith.constant 0 : i32
    %c0_i32_0 = arith.constant 0 : i32
    %c0_i32_1 = arith.constant 0 : i32
    return %c0_i32, %c0_i32_0 : i32, i32
  }
  func.func @transform_5(%arg0: i32) -> (i32, i32) {
    %c0_i32 = arith.constant 0 : i32
    %c0_i32_0 = arith.constant 0 : i32
    %c0_i32_1 = arith.constant 0 : i32
    return %c0_i32, %c0_i32_0 : i32, i32
  }
  func.func @transform_6(%arg0: i32) -> (i32, i32) {
    %c0_i32 = arith.constant 0 : i32
    %c0_i32_0 = arith.constant 0 : i32
    %c0_i32_1 = arith.constant 0 : i32
    return %c0_i32, %c0_i32_0 : i32, i32
  }
  func.func @transform_7(%arg0: i32) -> (i32, i32) {
    %c0_i32 = arith.constant 0 : i32
    %c0_i32_0 = arith.constant 0 : i32
    %c0_i32_1 = arith.constant 0 : i32
    return %c0_i32, %c0_i32_0 : i32, i32
  }
  func.func @transform_8(%arg0: i32) -> (i32, i32) {
    %c0_i32 = arith.constant 0 : i32
    %c0_i32_0 = arith.constant 0 : i32
    return %arg0, %c0_i32 : i32, i32
  }
}

</mosaic_0001>

<llo_original>
// kernel: tpu_custom_call.1
$region0: #{tpu_custom_call.1}
  #allocation0 [shape = 'u32[]', space=smem, size = 0x4, offset = 0x4, fixed_abs, tag = 'smem constant byte address 0x4 - core index']
  #allocation1 [shape = 'u32[144,128]{1,0:T(1,128)}', space=vmem, size = 0x12000, scoped, tag = 'internal scratch']
  #allocation2 [shape = 'f32[64,128]{1,0:T(8,128)}', space=vmem, size = 0x8000, scoped, tag = 'scratch operand']
  #allocation3 [shape = 'f32[1,1]{1,0:T(1,128)S(1)}', space=vmem, size = 0x200, scoped, tag = 'scoped memory for tpu_custom_call.1']
  %s0 = inlined_call_operand.vmem [shape: bf16[128,32], index: 0, kind: input, shape index: {}]
  %s1 = inlined_call_operand.vmem [shape: bf16[32,128], index: 1, kind: input, shape index: {}]
  %s2 = inlined_call_operand.vmem [shape: bf16[32,128], index: 2, kind: input, shape index: {}]
  %s3 = inlined_call_operand.vmem [shape: f32[1,128], index: 3, kind: input, shape index: {}]
  %s4 = inlined_call_operand.vmem [shape: bf16[32,32], index: 4, kind: input, shape index: {}]
  %s5 = inlined_call_operand.vmem [shape: f32[1,32], index: 5, kind: input, shape index: {}]
  %s6 = inlined_call_operand.vmem [shape: f32[1,32], index: 6, kind: input, shape index: {}]
  %s7 = inlined_call_operand.<no memory space> [shape: f32[1,1], index: 7, kind: input, shape index: {}]
  %s8 = inlined_call_operand.vmem [shape: f32[16,1], index: 8, kind: output, shape index: {}]
  %s9 = sld [smem:[#allocation0]]
  $region65: #{tpu_custom_call.1} parent=0
    _
  %s11 = ssub.s32 1, %s9
  %s12 = scalar_select 0, %s11, %s9
  %v13 = vstv %s7
  %14 = vst [vmem:[#allocation3] sm:$0x1] %v13
  loop: start=0, step=1, limit=4
  $region2: #{tpu_custom_call.1} parent=0 // loop_pre_header
    _
  $region3: #{tpu_custom_call.1} parent=0 // loop_header
    %s16 = sphi 0, %s20
    %p17 = scmp.ge.s32.totalorder %s16, 4
    %s26 = sphi 0, %s28
    %s29 = sphi 0, %s26
    %s30 = sphi 0, %s29
    %s46 = sphi 0, %s30
    %s50 = sphi 0, %s50
    %s52 = sphi 0, %s50
    %s53 = sphi 0, %s52
    %s67 = sphi 0, %s53
    %s71 = sphi 0, %s71
    %s73 = sphi 0, %s71
    %s74 = sphi 0, %s73
    %s88 = sphi 0, %s74
    %s92 = sphi 0, %s92
    %s94 = sphi 0, %s92
    %s95 = sphi 0, %s94
    %s109 = sphi 0, %s95
    %s113 = sphi 0, %s113
    %s115 = sphi 0, %s113
    %s116 = sphi 0, %s115
    %s130 = sphi 0, %s116
    %s134 = sphi 0, %s134
    %s136 = sphi 0, %s134
    %s137 = sphi 0, %s136
    %s151 = sphi 0, %s137
    %s155 = sphi 0, %s155
    %s157 = sphi 0, %s155
    %s158 = sphi 0, %s157
    %s172 = sphi 0, %s158
    %s176 = sphi 0, %s176
    %s178 = sphi 0, %s176
    %s179 = sphi 0, %s178
    %s193 = sphi 0, %s179
    %s199 = sphi 0, %s201
    %s202 = sphi 0, %s199
    %s203 = sphi 0, %s202
    %s219 = sphi 0, %s203
  $region4: #{tpu_custom_call.1} parent=0 // loop_header_branch
    %19 = sbr.rel (%p17) target = $region8
  $region5: #{tpu_custom_call.1} parent=0 // loop_body
    %s21 = ssub.s32 %s16, 1
    %s22 = ssub.s32 %s16, 2
    %s23 = sadd.s32 %s16, 1
    %s24 = ssub.s32 %s16, %s23
    %p25 = scmp.eq.s32.totalorder %s24, 0
    %s27 = sadd.s32 %s26, 1
    %s28 = scalar_select %p25, %s26, %s27
    %p31 = pneg %p25
    %p32 = scmp.eq.s32.totalorder %s16, 1
    %p33 = por %p31, %p32
    %p34 = scmp.ne.s32.totalorder %s26, %s29
    %p35 = scmp.eq.s32.totalorder %s16, 0
    %p36 = por %p34, %p35
    %p37 = scmp.ne.s32.totalorder %s26, %s29
    %p38 = scmp.eq.s32.totalorder %s21, 1
    %p39 = por %p37, %p38
    %p40 = scmp.ne.s32.totalorder %s29, %s30
    %p41 = scmp.eq.s32.totalorder %s21, 0
    %p42 = por %p40, %p41
    %p43 = scmp.ne.s32.totalorder %s29, %s30
    %p44 = scmp.eq.s32.totalorder %s22, 1
    %p45 = por %p43, %p44
    %p47 = scmp.ne.s32.totalorder %s30, %s46
    %p48 = scmp.eq.s32.totalorder %s22, 0
    %p49 = por %p47, %p48
    %s51 = sadd.s32 %s50, 1
    %p54 = scmp.eq.s32.totalorder %s16, 1
    %p55 = scmp.ne.s32.totalorder %s50, %s52
    %p56 = scmp.eq.s32.totalorder %s16, 0
    %p57 = por %p55, %p56
    %p58 = scmp.ne.s32.totalorder %s50, %s52
    %p59 = scmp.eq.s32.totalorder %s21, 1
    %p60 = por %p58, %p59
    %p61 = scmp.ne.s32.totalorder %s52, %s53
    %p62 = scmp.eq.s32.totalorder %s21, 0
    %p63 = por %p61, %p62
    %p64 = scmp.ne.s32.totalorder %s52, %s53
    %p65 = scmp.eq.s32.totalorder %s22, 1
    %p66 = por %p64, %p65
    %p68 = scmp.ne.s32.totalorder %s53, %s67
    %p69 = scmp.eq.s32.totalorder %s22, 0
    %p70 = por %p68, %p69
    %s72 = sadd.s32 %s71, 1
    %p75 = scmp.eq.s32.totalorder %s16, 1
    %p76 = scmp.ne.s32.totalorder %s71, %s73
    %p77 = scmp.eq.s32.totalorder %s16, 0
    %p78 = por %p76, %p77
    %p79 = scmp.ne.s32.totalorder %s71, %s73
    %p80 = scmp.eq.s32.totalorder %s21, 1
    %p81 = por %p79, %p80
    %p82 = scmp.ne.s32.totalorder %s73, %s74
    %p83 = scmp.eq.s32.totalorder %s21, 0
    %p84 = por %p82, %p83
    %p85 = scmp.ne.s32.totalorder %s73, %s74
    %p86 = scmp.eq.s32.totalorder %s22, 1
    %p87 = por %p85, %p86
    %p89 = scmp.ne.s32.totalorder %s74, %s88
    %p90 = scmp.eq.s32.totalorder %s22, 0
    %p91 = por %p89, %p90
    %s93 = sadd.s32 %s92, 1
    %p96 = scmp.eq.s32.totalorder %s16, 1
    %p97 = scmp.ne.s32.totalorder %s92, %s94
    %p98 = scmp.eq.s32.totalorder %s16, 0
    %p99 = por %p97, %p98
    %p100 = scmp.ne.s32.totalorder %s92, %s94
    %p101 = scmp.eq.s32.totalorder %s21, 1
    %p102 = por %p100, %p101
    %p103 = scmp.ne.s32.totalorder %s94, %s95
    %p104 = scmp.eq.s32.totalorder %s21, 0
    %p105 = por %p103, %p104
    %p106 = scmp.ne.s32.totalorder %s94, %s95
    %p107 = scmp.eq.s32.totalorder %s22, 1
    %p108 = por %p106, %p107
    %p110 = scmp.ne.s32.totalorder %s95, %s109
    %p111 = scmp.eq.s32.totalorder %s22, 0
    %p112 = por %p110, %p111
    %s114 = sadd.s32 %s113, 1
    %p117 = scmp.eq.s32.totalorder %s16, 1
    %p118 = scmp.ne.s32.totalorder %s113, %s115
    %p119 = scmp.eq.s32.totalorder %s16, 0
    %p120 = por %p118, %p119
    %p121 = scmp.ne.s32.totalorder %s113, %s115
    %p122 = scmp.eq.s32.totalorder %s21, 1
    %p123 = por %p121, %p122
    %p124 = scmp.ne.s32.totalorder %s115, %s116
    %p125 = scmp.eq.s32.totalorder %s21, 0
    %p126 = por %p124, %p125
    %p127 = scmp.ne.s32.totalorder %s115, %s116
    %p128 = scmp.eq.s32.totalorder %s22, 1
    %p129 = por %p127, %p128
    %p131 = scmp.ne.s32.totalorder %s116, %s130
    %p132 = scmp.eq.s32.totalorder %s22, 0
    %p133 = por %p131, %p132
    %s135 = sadd.s32 %s134, 1
    %p138 = scmp.eq.s32.totalorder %s16, 1
    %p139 = scmp.ne.s32.totalorder %s134, %s136
    %p140 = scmp.eq.s32.totalorder %s16, 0
    %p141 = por %p139, %p140
    %p142 = scmp.ne.s32.totalorder %s134, %s136
    %p143 = scmp.eq.s32.totalorder %s21, 1
    %p144 = por %p142, %p143
    %p145 = scmp.ne.s32.totalorder %s136, %s137
    %p146 = scmp.eq.s32.totalorder %s21, 0
    %p147 = por %p145, %p146
    %p148 = scmp.ne.s32.totalorder %s136, %s137
    %p149 = scmp.eq.s32.totalorder %s22, 1
    %p150 = por %p148, %p149
    %p152 = scmp.ne.s32.totalorder %s137, %s151
    %p153 = scmp.eq.s32.totalorder %s22, 0
    %p154 = por %p152, %p153
    %s156 = sadd.s32 %s155, 1
    %p159 = scmp.eq.s32.totalorder %s16, 1
    %p160 = scmp.ne.s32.totalorder %s155, %s157
    %p161 = scmp.eq.s32.totalorder %s16, 0
    %p162 = por %p160, %p161
    %p163 = scmp.ne.s32.totalorder %s155, %s157
    %p164 = scmp.eq.s32.totalorder %s21, 1
    %p165 = por %p163, %p164
    %p166 = scmp.ne.s32.totalorder %s157, %s158
    %p167 = scmp.eq.s32.totalorder %s21, 0
    %p168 = por %p166, %p167
    %p169 = scmp.ne.s32.totalorder %s157, %s158
    %p170 = scmp.eq.s32.totalorder %s22, 1
    %p171 = por %p169, %p170
    %p173 = scmp.ne.s32.totalorder %s158, %s172
    %p174 = scmp.eq.s32.totalorder %s22, 0
    %p175 = por %p173, %p174
    %s177 = sadd.s32 %s176, 1
    %p180 = scmp.eq.s32.totalorder %s16, 1
    %p181 = scmp.ne.s32.totalorder %s176, %s178
    %p182 = scmp.eq.s32.totalorder %s16, 0
    %p183 = por %p181, %p182
    %p184 = scmp.ne.s32.totalorder %s176, %s178
    %p185 = scmp.eq.s32.totalorder %s21, 1
    %p186 = por %p184, %p185
    %p187 = scmp.ne.s32.totalorder %s178, %s179
    %p188 = scmp.eq.s32.totalorder %s21, 0
    %p189 = por %p187, %p188
    %p190 = scmp.ne.s32.totalorder %s178, %s179
    %p191 = scmp.eq.s32.totalorder %s22, 1
    %p192 = por %p190, %p191
    %p194 = scmp.ne.s32.totalorder %s179, %s193
    %p195 = scmp.eq.s32.totalorder %s22, 0
    %p196 = por %p194, %p195
    %s197 = ssub.s32 %s16, %s23
    %p198 = scmp.eq.s32.totalorder %s197, 0
    %s200 = sadd.s32 %s199, 1
    %s201 = scalar_select %p198, %s199, %s200
    %p204 = pneg %p198
    %p205 = scmp.eq.s32.totalorder %s16, 1
    %p206 = por %p204, %p205
    %p207 = scmp.ne.s32.totalorder %s199, %s202
    %p208 = scmp.eq.s32.totalorder %s16, 0
    %p209 = por %p207, %p208
    %p210 = scmp.ne.s32.totalorder %s199, %s202
    %p211 = scmp.eq.s32.totalorder %s21, 1
    %p212 = por %p210, %p211
    %p213 = scmp.ne.s32.totalorder %s202, %s203
    %p214 = scmp.eq.s32.totalorder %s21, 0
    %p215 = por %p213, %p214
    %p216 = scmp.ne.s32.totalorder %s202, %s203
    %p217 = scmp.eq.s32.totalorder %s22, 1
    %p218 = por %p216, %p217
    %p220 = scmp.ne.s32.totalorder %s203, %s219
    %p221 = scmp.eq.s32.totalorder %s22, 0
    %p222 = por %p220, %p221
    %p223 = scmp.le.s32.totalorder 1, %s16
    %p224 = scmp.lt.s32.totalorder %s16, 3
    %p225 = pnand %p223, %p224
    %p226 = pneg %p225
    // Predicated region
    $region9: #{tpu_custom_call.1} parent=5 // pred_check
      _
    $region10: #{tpu_custom_call.1} parent=5 // pred_check_branch
      %228 = sbr.rel (%p225) target = $region12
    $region11: #{tpu_custom_call.1} parent=5 // pred_region
      %s229 = ssub.s32 %s16, 1
      // Predicated region
      $region13: #{tpu_custom_call.1} parent=11 // pred_check
        %p230 = pneg %p63
      $region14: #{tpu_custom_call.1} parent=11 // pred_check_branch
        %232 = sbr.rel (%p230) target = $region16
      $region15: #{tpu_custom_call.1} parent=11 // pred_region
        _
      $region16: #{tpu_custom_call.1} parent=11 // pred_fallthru
        _
      // Predicated region
      $region17: #{tpu_custom_call.1} parent=11 // pred_check
        %p233 = pneg %p84
      $region18: #{tpu_custom_call.1} parent=11 // pred_check_branch
        %235 = sbr.rel (%p233) target = $region20
      $region19: #{tpu_custom_call.1} parent=11 // pred_region
        _
      $region20: #{tpu_custom_call.1} parent=11 // pred_fallthru
        _
      // Predicated region
      $region21: #{tpu_custom_call.1} parent=11 // pred_check
        %p236 = pneg %p105
      $region22: #{tpu_custom_call.1} parent=11 // pred_check_branch
        %238 = sbr.rel (%p236) target = $region24
      $region23: #{tpu_custom_call.1} parent=11 // pred_region
        _
      $region24: #{tpu_custom_call.1} parent=11 // pred_fallthru
        _
      // Predicated region
      $region25: #{tpu_custom_call.1} parent=11 // pred_check
        %p239 = pneg %p126
      $region26: #{tpu_custom_call.1} parent=11 // pred_check_branch
        %241 = sbr.rel (%p239) target = $region28
      $region27: #{tpu_custom_call.1} parent=11 // pred_region
        _
      $region28: #{tpu_custom_call.1} parent=11 // pred_fallthru
        _
      // Predicated region
      $region29: #{tpu_custom_call.1} parent=11 // pred_check
        %p242 = pneg %p147
      $region30: #{tpu_custom_call.1} parent=11 // pred_check_branch
        %244 = sbr.rel (%p242) target = $region32
      $region31: #{tpu_custom_call.1} parent=11 // pred_region
        _
      $region32: #{tpu_custom_call.1} parent=11 // pred_fallthru
        _
      // Predicated region
      $region33: #{tpu_custom_call.1} parent=11 // pred_check
        %p245 = pneg %p168
      $region34: #{tpu_custom_call.1} parent=11 // pred_check_branch
        %247 = sbr.rel (%p245) target = $region36
      $region35: #{tpu_custom_call.1} parent=11 // pred_region
        _
      $region36: #{tpu_custom_call.1} parent=11 // pred_fallthru
        _
      // Predicated region
      $region37: #{tpu_custom_call.1} parent=11 // pred_check
        %p248 = pneg %p189
      $region38: #{tpu_custom_call.1} parent=11 // pred_check_branch
        %250 = sbr.rel (%p248) target = $region40
      $region39: #{tpu_custom_call.1} parent=11 // pred_region
        _
      $region40: #{tpu_custom_call.1} parent=11 // pred_fallthru
        _
    $region12: #{tpu_custom_call.1} parent=5 // pred_fallthru
      _
    %p251 = scmp.lt.s32.totalorder %s16, 2
    // Predicated region
    $region41: #{tpu_custom_call.1} parent=5 // pred_check
      %p252 = pneg %p251
    $region42: #{tpu_custom_call.1} parent=5 // pred_check_branch
      %254 = sbr.rel (%p252) target = $region44
    $region43: #{tpu_custom_call.1} parent=5 // pred_region
      // Predicated region
      $region45: #{tpu_custom_call.1} parent=43 // pred_check
        %p255 = pneg %p36
      $region46: #{tpu_custom_call.1} parent=43 // pred_check_branch
        %257 = sbr.rel (%p255) target = $region48
      $region47: #{tpu_custom_call.1} parent=43 // pred_region
        %s258 = smul.u32 8, %s16
        %p259 = scmp.lt.s32.totalorder %s258, 15
        %s260 = scalar_select %p259, %s258, 15
        %s261 = smul.addr %s260, 4
        %s262 = scalar_lea.vmem %s0, %s261
        %s263 = smul.u32 8, %s16
      $region48: #{tpu_custom_call.1} parent=43 // pred_fallthru
        _
    $region44: #{tpu_custom_call.1} parent=5 // pred_fallthru
      _
    %p264 = scmp.le.s32.totalorder 1, %s16
    %p265 = scmp.lt.s32.totalorder %s16, 3
    %p266 = pnand %p264, %p265
    %p267 = pneg %p266
    // Predicated region
    $region49: #{tpu_custom_call.1} parent=5 // pred_check
      _
    $region50: #{tpu_custom_call.1} parent=5 // pred_check_branch
      %269 = sbr.rel (%p266) target = $region52
    $region51: #{tpu_custom_call.1} parent=5 // pred_region
      %s270 = ssub.s32 %s16, 1
      %s271 = smul.u32 8, %s21
      %p272 = scmp.lt.s32.totalorder %s271, 15
      %s273 = scalar_select %p272, %s271, 15
      %s274 = smul.addr %s273, 4
      %s275 = scalar_lea.vmem %s0, %s274
      %p276 = pneg %p42
      %p277 = pneg %p39
      %p278 = pneg %p63
      %p279 = pneg %p60
      %p280 = pneg %p84
      %p281 = pneg %p81
      %p282 = pneg %p105
      %p283 = pneg %p102
      %p284 = pneg %p126
      %p285 = pneg %p123
      %p286 = pneg %p147
      %p287 = pneg %p144
      %p288 = pneg %p168
      %p289 = pneg %p165
      %p290 = pneg %p189
      %p291 = pneg %p186
      %p292 = pneg %p215
      %p293 = pneg %p212
      %p294 = scmp.lt.s32.totalorder %s21, 1
      %s295 = scalar_select %p294, %s21, 1
      %s296 = smul.addr %s295, 8
      %s297 = scalar_lea.vmem %s8, %s296
      %s298 = smul.u32 8, %s21
      %p299 = scmp.lt.s32.totalorder %s298, 15
      %s300 = scalar_select %p299, %s298, 15
      %s301 = smul.addr %s300, 4
      %s302 = scalar_lea.vmem %s0, %s301
      %s303 = smul.u32 8, %s21
      %p304 = scmp.lt.s32.totalorder %s21, 1
      %s305 = scalar_select %p304, %s21, 1
      %s306 = smul.addr %s305, 8
      %s307 = scalar_lea.vmem %s8, %s306
      %v309 = vld [vmem:[%s302] sm:$0xf]
      %v310 = vld [vmem:[%s302 + $0x4] sm:$0xf]
      %v311 = vld [vmem:[%s302 + $0x8] sm:$0xf]
      %v312 = vld [vmem:[%s302 + $0xc] sm:$0xf]
      %v313 = vld [vmem:[%s302 + $0x10] sm:$0xf]
      %v314 = vld [vmem:[%s302 + $0x14] sm:$0xf]
      %v315 = vld [vmem:[%s302 + $0x18] sm:$0xf]
      %v316 = vld [vmem:[%s302 + $0x1c] sm:$0xf]
      %v317 = vld [vmem:[%s1] sm:$0xf]
      %v318 = vld [vmem:[%s1 + $0x4] sm:$0xf]
      %v319 = vld [vmem:[%s1 + $0x8] sm:$0xf]
      %v320 = vld [vmem:[%s1 + $0xc] sm:$0xf]
      %v321 = vld [vmem:[%s3] sm:$0x1]
      %v323 = vlaneseq
      %v324 = vshrl.u32 %v323, 7
      %v325 = vsub.s32 0, %v324
      %v326 = vrot.slane %v321, %v325
      %v336 = vunpack.c.l.b16 %v309
      %v337 = vunpack.c.l.b16 %v310
      %v338 = vunpack.c.l.b16 %v311
      %v339 = vunpack.c.l.b16 %v312
      %v340 = vunpack.c.l.b16 %v313
      %v341 = vunpack.c.l.b16 %v314
      %v342 = vunpack.c.l.b16 %v315
      %v343 = vunpack.c.l.b16 %v316
      %v344 = vpack.c.b16 %v337, %v336
      %v345 = vpack.c.b16 %v339, %v338
      %v346 = vpack.c.b16 %v341, %v340
      %v347 = vpack.c.b16 %v343, %v342
      %v352 = vunpack.c.l.b16 %v317
      %v353 = vunpack.c.l.b16 %v318
      %v354 = vunpack.c.l.b16 %v319
      %v355 = vunpack.c.l.b16 %v320
      %v356 = vpack.c.b16 %v353, %v352
      %v357 = vpack.c.b16 %v355, %v354
      %vm360 = vcmask 261120
      %v362 = vsel %vm360, %v344, 0
      %v365 = vsel %vm360, %v345, 0
      %v368 = vsel %vm360, %v346, 0
      %v371 = vsel %vm360, %v347, 0
      %373 = vmatprep.subr.bf16.mxu0 0
      %374 = vmatpush1.bf16.msra.mxu0 0
      %375 = vmatprep.subr.bf16.mxu0 0
      %376 = vmatpush1.bf16.msra.mxu0 0
      %377 = vmatprep.subr.bf16.mxu0 0
      %378 = vmatpush1.bf16.msra.mxu0 0
      %379 = vmatprep.subr.bf16.mxu0 0
      %380 = vmatpush1.bf16.msra.mxu0 0
      %381 = vmatprep.subr.bf16.mxu0 0
      %382 = vmatpush1.bf16.msra.mxu0 0
      %383 = vmatprep.subr.bf16.mxu0 0
      %384 = vmatpush1.bf16.msra.mxu0 0
      %385 = vmatprep.subr.bf16.mxu0 0
      %386 = vmatpush1.bf16.msra.mxu0 %v357
      %387 = vmatprep.subr.bf16.mxu0 0
      %388 = vmatpush1.bf16.msra.mxu0 %v356
      %389 = vmatprep.subr.bf16.mxu0 0
      %390 = vmatpush2.bf16.msra.mxu0 0
      %391 = vmatprep.subr.bf16.mxu0 0
      %392 = vmatpush2.bf16.msra.mxu0 0
      %393 = vmatprep.subr.bf16.mxu0 0
      %394 = vmatpush2.bf16.msra.mxu0 0
      %395 = vmatprep.subr.bf16.mxu0 0
      %396 = vmatpush2.bf16.msra.mxu0 0
      %397 = vmatprep.subr.bf16.mxu0 0
      %398 = vmatpush2.bf16.msra.mxu0 0
      %399 = vmatprep.subr.bf16.mxu0 0
      %400 = vmatpush2.bf16.msra.mxu0 0
      %401 = vmatprep.subr.bf16.mxu0 0
      %402 = vmatpush2.bf16.msra.mxu0 0
      %403 = vmatprep.subr.bf16.mxu0 0
      %404 = vmatpush2.bf16.msra.mxu0 0
      %405 = vmatprep.mubr.bf16.mxu0 0
      %406 = vmatmul.mubr.bf16.gmra.mxu0 %v362
      %v407 = vpop.f32.mrf.mxu0
      %v408 = vadd.f32 %v326, %v407
      %v409 = vpop.f32.mrf.mxu0
      %v410 = vpop.f32.mrf.mxu0
      %v411 = vadd.f32 %v326, %v410
      %v412 = vpop.f32.mrf.mxu0
      %413 = vmatprep.mubr.bf16.mxu0 0
      %414 = vmatmul.mubr.bf16.gmra.mxu0 %v365
      %v415 = vpop.f32.mrf.mxu0
      %v416 = vadd.f32 %v326, %v415
      %v417 = vpop.f32.mrf.mxu0
      %v418 = vpop.f32.mrf.mxu0
      %v419 = vadd.f32 %v326, %v418
      %v420 = vpop.f32.mrf.mxu0
      %421 = vmatprep.mubr.bf16.mxu0 0
      %422 = vmatmul.mubr.bf16.gmra.mxu0 %v368
      %v423 = vpop.f32.mrf.mxu0
      %v424 = vadd.f32 %v326, %v423
      %v425 = vpop.f32.mrf.mxu0
      %v426 = vpop.f32.mrf.mxu0
      %v427 = vadd.f32 %v326, %v426
      %v428 = vpop.f32.mrf.mxu0
      %429 = vmatprep.mubr.bf16.mxu0 0
      %430 = vmatmul.mubr.bf16.gmra.mxu0 %v371
      %v431 = vpop.f32.mrf.mxu0
      %v432 = vadd.f32 %v326, %v431
      %v433 = vpop.f32.mrf.mxu0
      %v434 = vpop.f32.mrf.mxu0
      %v435 = vadd.f32 %v326, %v434
      %v436 = vpop.f32.mrf.mxu0
      %437 = vdwg.mxu0
      %438 = vst [vmem:[#allocation2] sm:$0xff] %v408
      %439 = vst [vmem:[#allocation2 + $0x8] sm:$0xff] %v411
      %440 = vst [vmem:[#allocation2 + $0x10] sm:$0xff] %v416
      %441 = vst [vmem:[#allocation2 + $0x18] sm:$0xff] %v419
      %442 = vst [vmem:[#allocation2 + $0x20] sm:$0xff] %v424
      %443 = vst [vmem:[#allocation2 + $0x28] sm:$0xff] %v427
      %444 = vst [vmem:[#allocation2 + $0x30] sm:$0xff] %v432
      %445 = vst [vmem:[#allocation2 + $0x38] sm:$0xff] %v435
      %v446 = vld [vmem:[%s2] sm:$0xf]
      %v447 = vld [vmem:[%s2 + $0x4] sm:$0xf]
      %v448 = vld [vmem:[%s2 + $0x8] sm:$0xf]
      %v449 = vld [vmem:[%s2 + $0xc] sm:$0xf]
      %v450 = vld [vmem:[#allocation2] ss:$8 sm:$0xf]
      %v451 = vld [vmem:[#allocation2] ss:$8 sm:$0xf0]
      %v452 = vor.u32 %v450, %v451
      %v457 = vunpack.c.l.b16 %v446
      %v458 = vunpack.c.l.b16 %v447
      %v459 = vunpack.c.l.b16 %v448
      %v460 = vunpack.c.l.b16 %v449
      %v461 = vpack.c.b16 %v458, %v457
      %v462 = vpack.c.b16 %v460, %v459
      %v466 = vsel %vm360, 0, 0
      %468 = vmatprep.subr.bf16.mxu0 0
      %469 = vmatpush1.bf16.msra.mxu0 0
      %470 = vmatprep.subr.bf16.mxu0 0
      %471 = vmatpush1.bf16.msra.mxu0 0
      %472 = vmatprep.subr.bf16.mxu0 0
      %473 = vmatpush1.bf16.msra.mxu0 0
      %474 = vmatprep.subr.bf16.mxu0 0
      %475 = vmatpush1.bf16.msra.mxu0 0
      %476 = vmatprep.subr.bf16.mxu0 0
      %477 = vmatpush1.bf16.msra.mxu0 0
      %478 = vmatprep.subr.bf16.mxu0 0
      %479 = vmatpush1.bf16.msra.mxu0 0
      %480 = vmatprep.subr.bf16.mxu0 0
      %481 = vmatpush1.bf16.msra.mxu0 %v462
      %482 = vmatprep.subr.bf16.mxu0 0
      %483 = vmatpush1.bf16.msra.mxu0 %v461
      %484 = vmatprep.subr.bf16.mxu0 0
      %485 = vmatpush2.bf16.msra.mxu0 0
      %486 = vmatprep.subr.bf16.mxu0 0
      %487 = vmatpush2.bf16.msra.mxu0 0
      %488 = vmatprep.subr.bf16.mxu0 0
      %489 = vmatpush2.bf16.msra.mxu0 0
      %490 = vmatprep.subr.bf16.mxu0 0
      %491 = vmatpush2.bf16.msra.mxu0 0
      %492 = vmatprep.subr.bf16.mxu0 0
      %493 = vmatpush2.bf16.msra.mxu0 0
      %494 = vmatprep.subr.bf16.mxu0 0
      %495 = vmatpush2.bf16.msra.mxu0 0
      %496 = vmatprep.subr.bf16.mxu0 0
      %497 = vmatpush2.bf16.msra.mxu0 0
      %498 = vmatprep.subr.bf16.mxu0 0
      %499 = vmatpush2.bf16.msra.mxu0 0
      %500 = vmatprep.mubr.bf16.mxu0 0
      %501 = vmatmul.mubr.bf16.gmra.mxu0 %v466
      %v502 = vpop.f32.mrf.mxu0
      %v503 = vadd.f32 0.0, %v502
      %v504 = vpop.f32.mrf.mxu0
      %v505 = vpop.f32.mrf.mxu0
      %v506 = vpop.f32.mrf.mxu0
      %507 = vdwg.mxu0
      %v508 = vadd.f32 %v452, %v503
      %v509 = vtanh.pop %v508
      %v510 = vmul.f32 %v509, 0.5
      %v511 = vadd.f32 %v510, 0.5
      %v512 = vmul.f32 %v511, 0.0
      %514 = vrot.lane.b32.xlu0 %v509, 64
      %v515 = vpop.permute.xlu0 %514
      %v517 = vmul.f32 %v511, %v515
      %519 = vrot.lane.b32.xlu0 %v517, 32
      %v520 = vpop.permute.xlu0 %519
      %v522 = vadd.f32 %v512, %v520
      %v523 = vtanh.pop %v522
      %525 = vrot.lane.b32.xlu0 %v523, 64
      %v526 = vpop.permute.xlu0 %525
      %v528 = vmul.f32 %v511, %v526
      %s529 = scalar_lea.vmem [#allocation2], 1
      %v530 = vld [vmem:[%s529] ss:$8 sm:$0xf]
      %v531 = vld [vmem:[%s529] ss:$8 sm:$0xf0]
      %v532 = vor.u32 %v530, %v531
      %v533 = vpack.c.bf16 %v528, %v528
      %535 = vrot.lane.b32.xlu0 %v533, 32
      %v536 = vpop.permute.xlu0 %535
      %v538 = vsel %vm360, %v536, 0
      %540 = vmatprep.subr.bf16.mxu0 0
      %541 = vmatpush1.bf16.msra.mxu0 0
      %542 = vmatprep.subr.bf16.mxu0 0
      %543 = vmatpush1.bf16.msra.mxu0 0
      %544 = vmatprep.subr.bf16.mxu0 0
      %545 = vmatpush1.bf16.msra.mxu0 0
      %546 = vmatprep.subr.bf16.mxu0 0
      %547 = vmatpush1.bf16.msra.mxu0 0
      %548 = vmatprep.subr.bf16.mxu0 0
      %549 = vmatpush1.bf16.msra.mxu0 0
      %550 = vmatprep.subr.bf16.mxu0 0
      %551 = vmatpush1.bf16.msra.mxu0 0
      %552 = vmatprep.subr.bf16.mxu0 0
      %553 = vmatpush1.bf16.msra.mxu0 %v462
      %554 = vmatprep.subr.bf16.mxu0 0
      %555 = vmatpush1.bf16.msra.mxu0 %v461
      %556 = vmatprep.subr.bf16.mxu0 0
      %557 = vmatpush2.bf16.msra.mxu0 0
      %558 = vmatprep.subr.bf16.mxu0 0
      %559 = vmatpush2.bf16.msra.mxu0 0
      %560 = vmatprep.subr.bf16.mxu0 0
      %561 = vmatpush2.bf16.msra.mxu0 0
      %562 = vmatprep.subr.bf16.mxu0 0
      %563 = vmatpush2.bf16.msra.mxu0 0
      %564 = vmatprep.subr.bf16.mxu0 0
      %565 = vmatpush2.bf16.msra.mxu0 0
      %566 = vmatprep.subr.bf16.mxu0 0
      %567 = vmatpush2.bf16.msra.mxu0 0
      %568 = vmatprep.subr.bf16.mxu0 0
      %569 = vmatpush2.bf16.msra.mxu0 0
      %570 = vmatprep.subr.bf16.mxu0 0
      %571 = vmatpush2.bf16.msra.mxu0 0
      %572 = vmatprep.mubr.bf16.mxu0 0
      %573 = vmatmul.mubr.bf16.gmra.mxu0 %v538
      %v574 = vpop.f32.mrf.mxu0
      %v575 = vadd.f32 0.0, %v574
      %v576 = vpop.f32.mrf.mxu0
      %v577 = vpop.f32.mrf.mxu0
      %v578 = vpop.f32.mrf.mxu0
      %579 = vdwg.mxu0
      %v580 = vadd.f32 %v532, %v575
      %v581 = vtanh.pop %v580
      %v582 = vmul.f32 %v581, 0.5
      %v583 = vadd.f32 %v582, 0.5
      %v584 = vmul.f32 %v583, %v522
      %586 = vrot.lane.b32.xlu0 %v581, 64
      %v587 = vpop.permute.xlu0 %586
      %v589 = vmul.f32 %v583, %v587
      %591 = vrot.lane.b32.xlu0 %v589, 32
      %v592 = vpop.permute.xlu0 %591
      %v594 = vadd.f32 %v584, %v592
      %v595 = vtanh.pop %v594
      %597 = vrot.lane.b32.xlu0 %v595, 64
      %v598 = vpop.permute.xlu0 %597
      %v600 = vmul.f32 %v583, %v598
      %s601 = scalar_lea.vmem [#allocation2], 2
      %v602 = vld [vmem:[%s601] ss:$8 sm:$0xf]
      %v603 = vld [vmem:[%s601] ss:$8 sm:$0xf0]
      %v604 = vor.u32 %v602, %v603
      %v605 = vpack.c.bf16 %v600, %v600
      %607 = vrot.lane.b32.xlu0 %v605, 32
      %v608 = vpop.permute.xlu0 %607
      %v610 = vsel %vm360, %v608, 0
      %612 = vmatprep.subr.bf16.mxu0 0
      %613 = vmatpush1.bf16.msra.mxu0 0
      %614 = vmatprep.subr.bf16.mxu0 0
      %615 = vmatpush1.bf16.msra.mxu0 0
      %616 = vmatprep.subr.bf16.mxu0 0
      %617 = vmatpush1.bf16.msra.mxu0 0
      %618 = vmatprep.subr.bf16.mxu0 0
      %619 = vmatpush1.bf16.msra.mxu0 0
      %620 = vmatprep.subr.bf16.mxu0 0
      %621 = vmatpush1.bf16.msra.mxu0 0
      %622 = vmatprep.subr.bf16.mxu0 0
      %623 = vmatpush1.bf16.msra.mxu0 0
      %624 = vmatprep.subr.bf16.mxu0 0
      %625 = vmatpush1.bf16.msra.mxu0 %v462
      %626 = vmatprep.subr.bf16.mxu0 0
      %627 = vmatpush1.bf16.msra.mxu0 %v461
      %628 = vmatprep.subr.bf16.mxu0 0
      %629 = vmatpush2.bf16.msra.mxu0 0
      %630 = vmatprep.subr.bf16.mxu0 0
      %631 = vmatpush2.bf16.msra.mxu0 0
      %632 = vmatprep.subr.bf16.mxu0 0
      %633 = vmatpush2.bf16.msra.mxu0 0
      %634 = vmatprep.subr.bf16.mxu0 0
      %635 = vmatpush2.bf16.msra.mxu0 0
      %636 = vmatprep.subr.bf16.mxu0 0
      %637 = vmatpush2.bf16.msra.mxu0 0
      %638 = vmatprep.subr.bf16.mxu0 0
      %639 = vmatpush2.bf16.msra.mxu0 0
      %640 = vmatprep.subr.bf16.mxu0 0
      %641 = vmatpush2.bf16.msra.mxu0 0
      %642 = vmatprep.subr.bf16.mxu0 0
      %643 = vmatpush2.bf16.msra.mxu0 0
      %644 = vmatprep.mubr.bf16.mxu0 0
      %645 = vmatmul.mubr.bf16.gmra.mxu0 %v610
      %v646 = vpop.f32.mrf.mxu0
      %v647 = vadd.f32 0.0, %v646
      %v648 = vpop.f32.mrf.mxu0
      %v649 = vpop.f32.mrf.mxu0
      %v650 = vpop.f32.mrf.mxu0
      %651 = vdwg.mxu0
      %v652 = vadd.f32 %v604, %v647
      %v653 = vtanh.pop %v652
      %v654 = vmul.f32 %v653, 0.5
      %v655 = vadd.f32 %v654, 0.5
      %v656 = vmul.f32 %v655, %v594
      %658 = vrot.lane.b32.xlu0 %v653, 64
      %v659 = vpop.permute.xlu0 %658
      %v661 = vmul.f32 %v655, %v659
      %663 = vrot.lane.b32.xlu0 %v661, 32
      %v664 = vpop.permute.xlu0 %663
      %v666 = vadd.f32 %v656, %v664
      %v667 = vtanh.pop %v666
      %669 = vrot.lane.b32.xlu0 %v667, 64
      %v670 = vpop.permute.xlu0 %669
      %v672 = vmul.f32 %v655, %v670
      %s673 = scalar_lea.vmem [#allocation2], 3
      %v674 = vld [vmem:[%s673] ss:$8 sm:$0xf]
      %v675 = vld [vmem:[%s673] ss:$8 sm:$0xf0]
      %v676 = vor.u32 %v674, %v675
      %v677 = vpack.c.bf16 %v672, %v672
      %679 = vrot.lane.b32.xlu0 %v677, 32
      %v680 = vpop.permute.xlu0 %679
      %v682 = vsel %vm360, %v680, 0
      %684 = vmatprep.subr.bf16.mxu0 0
      %685 = vmatpush1.bf16.msra.mxu0 0
      %686 = vmatprep.subr.bf16.mxu0 0
      %687 = vmatpush1.bf16.msra.mxu0 0
      %688 = vmatprep.subr.bf16.mxu0 0
      %689 = vmatpush1.bf16.msra.mxu0 0
      %690 = vmatprep.subr.bf16.mxu0 0
      %691 = vmatpush1.bf16.msra.mxu0 0
      %692 = vmatprep.subr.bf16.mxu0 0
      %693 = vmatpush1.bf16.msra.mxu0 0
      %694 = vmatprep.subr.bf16.mxu0 0
      %695 = vmatpush1.bf16.msra.mxu0 0
      %696 = vmatprep.subr.bf16.mxu0 0
      %697 = vmatpush1.bf16.msra.mxu0 %v462
      %698 = vmatprep.subr.bf16.mxu0 0
      %699 = vmatpush1.bf16.msra.mxu0 %v461
      %700 = vmatprep.subr.bf16.mxu0 0
      %701 = vmatpush2.bf16.msra.mxu0 0
      %702 = vmatprep.subr.bf16.mxu0 0
      %703 = vmatpush2.bf16.msra.mxu0 0
      %704 = vmatprep.subr.bf16.mxu0 0
      %705 = vmatpush2.bf16.msra.mxu0 0
      %706 = vmatprep.subr.bf16.mxu0 0
      %707 = vmatpush2.bf16.msra.mxu0 0
      %708 = vmatprep.subr.bf16.mxu0 0
      %709 = vmatpush2.bf16.msra.mxu0 0
      %710 = vmatprep.subr.bf16.mxu0 0
      %711 = vmatpush2.bf16.msra.mxu0 0
      %712 = vmatprep.subr.bf16.mxu0 0
      %713 = vmatpush2.bf16.msra.mxu0 0
      %714 = vmatprep.subr.bf16.mxu0 0
      %715 = vmatpush2.bf16.msra.mxu0 0
      %716 = vmatprep.mubr.bf16.mxu0 0
      %717 = vmatmul.mubr.bf16.gmra.mxu0 %v682
      %v718 = vpop.f32.mrf.mxu0
      %v719 = vadd.f32 0.0, %v718
      %v720 = vpop.f32.mrf.mxu0
      %v721 = vpop.f32.mrf.mxu0
      %v722 = vpop.f32.mrf.mxu0
      %723 = vdwg.mxu0
      %v724 = vadd.f32 %v676, %v719
      %v725 = vtanh.pop %v724
      %v726 = vmul.f32 %v725, 0.5
      %v727 = vadd.f32 %v726, 0.5
      %v728 = vmul.f32 %v727, %v666
      %730 = vrot.lane.b32.xlu0 %v725, 64
      %v731 = vpop.permute.xlu0 %730
      %v733 = vmul.f32 %v727, %v731
      %735 = vrot.lane.b32.xlu0 %v733, 32
      %v736 = vpop.permute.xlu0 %735
      %v738 = vadd.f32 %v728, %v736
      %v739 = vtanh.pop %v738
      %741 = vrot.lane.b32.xlu0 %v739, 64
      %v742 = vpop.permute.xlu0 %741
      %v744 = vmul.f32 %v727, %v742
      %s745 = scalar_lea.vmem [#allocation2], 4
      %v746 = vld [vmem:[%s745] ss:$8 sm:$0xf]
      %v747 = vld [vmem:[%s745] ss:$8 sm:$0xf0]
      %v748 = vor.u32 %v746, %v747
      %v749 = vpack.c.bf16 %v744, %v744
      %751 = vrot.lane.b32.xlu0 %v749, 32
      %v752 = vpop.permute.xlu0 %751
      %v754 = vsel %vm360, %v752, 0
      %756 = vmatprep.subr.bf16.mxu0 0
      %757 = vmatpush1.bf16.msra.mxu0 0
      %758 = vmatprep.subr.bf16.mxu0 0
      %759 = vmatpush1.bf16.msra.mxu0 0
      %760 = vmatprep.subr.bf16.mxu0 0
      %761 = vmatpush1.bf16.msra.mxu0 0
      %762 = vmatprep.subr.bf16.mxu0 0
      %763 = vmatpush1.bf16.msra.mxu0 0
      %764 = vmatprep.subr.bf16.mxu0 0
      %765 = vmatpush1.bf16.msra.mxu0 0
      %766 = vmatprep.subr.bf16.mxu0 0
      %767 = vmatpush1.bf16.msra.mxu0 0
      %768 = vmatprep.subr.bf16.mxu0 0
      %769 = vmatpush1.bf16.msra.mxu0 %v462
      %770 = vmatprep.subr.bf16.mxu0 0
      %771 = vmatpush1.bf16.msra.mxu0 %v461
      %772 = vmatprep.subr.bf16.mxu0 0
      %773 = vmatpush2.bf16.msra.mxu0 0
      %774 = vmatprep.subr.bf16.mxu0 0
      %775 = vmatpush2.bf16.msra.mxu0 0
      %776 = vmatprep.subr.bf16.mxu0 0
      %777 = vmatpush2.bf16.msra.mxu0 0
      %778 = vmatprep.subr.bf16.mxu0 0
      %779 = vmatpush2.bf16.msra.mxu0 0
      %780 = vmatprep.subr.bf16.mxu0 0
      %781 = vmatpush2.bf16.msra.mxu0 0
      %782 = vmatprep.subr.bf16.mxu0 0
      %783 = vmatpush2.bf16.msra.mxu0 0
      %784 = vmatprep.subr.bf16.mxu0 0
      %785 = vmatpush2.bf16.msra.mxu0 0
      %786 = vmatprep.subr.bf16.mxu0 0
      %787 = vmatpush2.bf16.msra.mxu0 0
      %788 = vmatprep.mubr.bf16.mxu0 0
      %789 = vmatmul.mubr.bf16.gmra.mxu0 %v754
      %v790 = vpop.f32.mrf.mxu0
      %v791 = vadd.f32 0.0, %v790
      %v792 = vpop.f32.mrf.mxu0
      %v793 = vpop.f32.mrf.mxu0
      %v794 = vpop.f32.mrf.mxu0
      %795 = vdwg.mxu0
      %v796 = vadd.f32 %v748, %v791
      %v797 = vtanh.pop %v796
      %v798 = vmul.f32 %v797, 0.5
      %v799 = vadd.f32 %v798, 0.5
      %v800 = vmul.f32 %v799, %v738
      %802 = vrot.lane.b32.xlu0 %v797, 64
      %v803 = vpop.permute.xlu0 %802
      %v805 = vmul.f32 %v799, %v803
      %807 = vrot.lane.b32.xlu0 %v805, 32
      %v808 = vpop.permute.xlu0 %807
      %v810 = vadd.f32 %v800, %v808
      %v811 = vtanh.pop %v810
      %813 = vrot.lane.b32.xlu0 %v811, 64
      %v814 = vpop.permute.xlu0 %813
      %v816 = vmul.f32 %v799, %v814
      %s817 = scalar_lea.vmem [#allocation2], 5
      %v818 = vld [vmem:[%s817] ss:$8 sm:$0xf]
      %v819 = vld [vmem:[%s817] ss:$8 sm:$0xf0]
      %v820 = vor.u32 %v818, %v819
      %v821 = vpack.c.bf16 %v816, %v816
      %823 = vrot.lane.b32.xlu0 %v821, 32
      %v824 = vpop.permute.xlu0 %823
      %v826 = vsel %vm360, %v824, 0
      %828 = vmatprep.subr.bf16.mxu0 0
      %829 = vmatpush1.bf16.msra.mxu0 0
      %830 = vmatprep.subr.bf16.mxu0 0
      %831 = vmatpush1.bf16.msra.mxu0 0
      %832 = vmatprep.subr.bf16.mxu0 0
      %833 = vmatpush1.bf16.msra.mxu0 0
      %834 = vmatprep.subr.bf16.mxu0 0
      %835 = vmatpush1.bf16.msra.mxu0 0
      %836 = vmatprep.subr.bf16.mxu0 0
      %837 = vmatpush1.bf16.msra.mxu0 0
      %838 = vmatprep.subr.bf16.mxu0 0
      %839 = vmatpush1.bf16.msra.mxu0 0
      %840 = vmatprep.subr.bf16.mxu0 0
      %841 = vmatpush1.bf16.msra.mxu0 %v462
      %842 = vmatprep.subr.bf16.mxu0 0
      %843 = vmatpush1.bf16.msra.mxu0 %v461
      %844 = vmatprep.subr.bf16.mxu0 0
      %845 = vmatpush2.bf16.msra.mxu0 0
      %846 = vmatprep.subr.bf16.mxu0 0
      %847 = vmatpush2.bf16.msra.mxu0 0
      %848 = vmatprep.subr.bf16.mxu0 0
      %849 = vmatpush2.bf16.msra.mxu0 0
      %850 = vmatprep.subr.bf16.mxu0 0
      %851 = vmatpush2.bf16.msra.mxu0 0
      %852 = vmatprep.subr.bf16.mxu0 0
      %853 = vmatpush2.bf16.msra.mxu0 0
      %854 = vmatprep.subr.bf16.mxu0 0
      %855 = vmatpush2.bf16.msra.mxu0 0
      %856 = vmatprep.subr.bf16.mxu0 0
      %857 = vmatpush2.bf16.msra.mxu0 0
      %858 = vmatprep.subr.bf16.mxu0 0
      %859 = vmatpush2.bf16.msra.mxu0 0
      %860 = vmatprep.mubr.bf16.mxu0 0
      %861 = vmatmul.mubr.bf16.gmra.mxu0 %v826
      %v862 = vpop.f32.mrf.mxu0
      %v863 = vadd.f32 0.0, %v862
      %v864 = vpop.f32.mrf.mxu0
      %v865 = vpop.f32.mrf.mxu0
      %v866 = vpop.f32.mrf.mxu0
      %867 = vdwg.mxu0
      %v868 = vadd.f32 %v820, %v863
      %v869 = vtanh.pop %v868
      %v870 = vmul.f32 %v869, 0.5
      %v871 = vadd.f32 %v870, 0.5
      %v872 = vmul.f32 %v871, %v810
      %874 = vrot.lane.b32.xlu0 %v869, 64
      %v875 = vpop.permute.xlu0 %874
      %v877 = vmul.f32 %v871, %v875
      %879 = vrot.lane.b32.xlu0 %v877, 32
      %v880 = vpop.permute.xlu0 %879
      %v882 = vadd.f32 %v872, %v880
      %v883 = vtanh.pop %v882
      %885 = vrot.lane.b32.xlu0 %v883, 64
      %v886 = vpop.permute.xlu0 %885
      %v888 = vmul.f32 %v871, %v886
      %s889 = scalar_lea.vmem [#allocation2], 6
      %v890 = vld [vmem:[%s889] ss:$8 sm:$0xf]
      %v891 = vld [vmem:[%s889] ss:$8 sm:$0xf0]
      %v892 = vor.u32 %v890, %v891
      %v893 = vpack.c.bf16 %v888, %v888
      %895 = vrot.lane.b32.xlu0 %v893, 32
      %v896 = vpop.permute.xlu0 %895
      %v898 = vsel %vm360, %v896, 0
      %900 = vmatprep.subr.bf16.mxu0 0
      %901 = vmatpush1.bf16.msra.mxu0 0
      %902 = vmatprep.subr.bf16.mxu0 0
      %903 = vmatpush1.bf16.msra.mxu0 0
      %904 = vmatprep.subr.bf16.mxu0 0
      %905 = vmatpush1.bf16.msra.mxu0 0
      %906 = vmatprep.subr.bf16.mxu0 0
      %907 = vmatpush1.bf16.msra.mxu0 0
      %908 = vmatprep.subr.bf16.mxu0 0
      %909 = vmatpush1.bf16.msra.mxu0 0
      %910 = vmatprep.subr.bf16.mxu0 0
      %911 = vmatpush1.bf16.msra.mxu0 0
      %912 = vmatprep.subr.bf16.mxu0 0
      %913 = vmatpush1.bf16.msra.mxu0 %v462
      %914 = vmatprep.subr.bf16.mxu0 0
      %915 = vmatpush1.bf16.msra.mxu0 %v461
      %916 = vmatprep.subr.bf16.mxu0 0
      %917 = vmatpush2.bf16.msra.mxu0 0
      %918 = vmatprep.subr.bf16.mxu0 0
      %919 = vmatpush2.bf16.msra.mxu0 0
      %920 = vmatprep.subr.bf16.mxu0 0
      %921 = vmatpush2.bf16.msra.mxu0 0
      %922 = vmatprep.subr.bf16.mxu0 0
      %923 = vmatpush2.bf16.msra.mxu0 0
      %924 = vmatprep.subr.bf16.mxu0 0
      %925 = vmatpush2.bf16.msra.mxu0 0
      %926 = vmatprep.subr.bf16.mxu0 0
      %927 = vmatpush2.bf16.msra.mxu0 0
      %928 = vmatprep.subr.bf16.mxu0 0
      %929 = vmatpush2.bf16.msra.mxu0 0
      %930 = vmatprep.subr.bf16.mxu0 0
      %931 = vmatpush2.bf16.msra.mxu0 0
      %932 = vmatprep.mubr.bf16.mxu0 0
      %933 = vmatmul.mubr.bf16.gmra.mxu0 %v898
      %v934 = vpop.f32.mrf.mxu0
      %v935 = vadd.f32 0.0, %v934
      %v936 = vpop.f32.mrf.mxu0
      %v937 = vpop.f32.mrf.mxu0
      %v938 = vpop.f32.mrf.mxu0
      %939 = vdwg.mxu0
      %v940 = vadd.f32 %v892, %v935
      %v941 = vtanh.pop %v940
      %v942 = vmul.f32 %v941, 0.5
      %v943 = vadd.f32 %v942, 0.5
      %v944 = vmul.f32 %v943, %v882
      %946 = vrot.lane.b32.xlu0 %v941, 64
      %v947 = vpop.permute.xlu0 %946
      %v949 = vmul.f32 %v943, %v947
      %951 = vrot.lane.b32.xlu0 %v949, 32
      %v952 = vpop.permute.xlu0 %951
      %v954 = vadd.f32 %v944, %v952
      %v955 = vtanh.pop %v954
      %957 = vrot.lane.b32.xlu0 %v955, 64
      %v958 = vpop.permute.xlu0 %957
      %v960 = vmul.f32 %v943, %v958
      %s961 = scalar_lea.vmem [#allocation2], 7
      %v962 = vld [vmem:[%s961] ss:$8 sm:$0xf]
      %v963 = vld [vmem:[%s961] ss:$8 sm:$0xf0]
      %v964 = vor.u32 %v962, %v963
      %v965 = vpack.c.bf16 %v960, %v960
      %967 = vrot.lane.b32.xlu0 %v965, 32
      %v968 = vpop.permute.xlu0 %967
      %v970 = vsel %vm360, %v968, 0
      %972 = vmatprep.subr.bf16.mxu0 0
      %973 = vmatpush1.bf16.msra.mxu0 0
      %974 = vmatprep.subr.bf16.mxu0 0
      %975 = vmatpush1.bf16.msra.mxu0 0
      %976 = vmatprep.subr.bf16.mxu0 0
      %977 = vmatpush1.bf16.msra.mxu0 0
      %978 = vmatprep.subr.bf16.mxu0 0
      %979 = vmatpush1.bf16.msra.mxu0 0
      %980 = vmatprep.subr.bf16.mxu0 0
      %981 = vmatpush1.bf16.msra.mxu0 0
      %982 = vmatprep.subr.bf16.mxu0 0
      %983 = vmatpush1.bf16.msra.mxu0 0
      %984 = vmatprep.subr.bf16.mxu0 0
      %985 = vmatpush1.bf16.msra.mxu0 %v462
      %986 = vmatprep.subr.bf16.mxu0 0
      %987 = vmatpush1.bf16.msra.mxu0 %v461
      %988 = vmatprep.subr.bf16.mxu0 0
      %989 = vmatpush2.bf16.msra.mxu0 0
      %990 = vmatprep.subr.bf16.mxu0 0
      %991 = vmatpush2.bf16.msra.mxu0 0
      %992 = vmatprep.subr.bf16.mxu0 0
      %993 = vmatpush2.bf16.msra.mxu0 0
      %994 = vmatprep.subr.bf16.mxu0 0
      %995 = vmatpush2.bf16.msra.mxu0 0
      %996 = vmatprep.subr.bf16.mxu0 0
      %997 = vmatpush2.bf16.msra.mxu0 0
      %998 = vmatprep.subr.bf16.mxu0 0
      %999 = vmatpush2.bf16.msra.mxu0 0
      %1000 = vmatprep.subr.bf16.mxu0 0
      %1001 = vmatpush2.bf16.msra.mxu0 0
      %1002 = vmatprep.subr.bf16.mxu0 0
      %1003 = vmatpush2.bf16.msra.mxu0 0
      %1004 = vmatprep.mubr.bf16.mxu0 0
      %1005 = vmatmul.mubr.bf16.gmra.mxu0 %v970
      %v1006 = vpop.f32.mrf.mxu0
      %v1007 = vadd.f32 0.0, %v1006
      %v1008 = vpop.f32.mrf.mxu0
      %v1009 = vpop.f32.mrf.mxu0
      %v1010 = vpop.f32.mrf.mxu0
      %1011 = vdwg.mxu0
      %v1012 = vadd.f32 %v964, %v1007
      %v1013 = vtanh.pop %v1012
      %v1014 = vmul.f32 %v1013, 0.5
      %v1015 = vadd.f32 %v1014, 0.5
      %v1016 = vmul.f32 %v1015, %v954
      %1018 = vrot.lane.b32.xlu0 %v1013, 64
      %v1019 = vpop.permute.xlu0 %1018
      %v1021 = vmul.f32 %v1015, %v1019
      %1023 = vrot.lane.b32.xlu0 %v1021, 32
      %v1024 = vpop.permute.xlu0 %1023
      %v1026 = vadd.f32 %v1016, %v1024
      %v1027 = vtanh.pop %v1026
      %1029 = vrot.lane.b32.xlu0 %v1027, 64
      %v1030 = vpop.permute.xlu0 %1029
      %v1032 = vmul.f32 %v1015, %v1030
      %v1033 = vpack.c.bf16 %v1032, %v1032
      %v1034 = vld [vmem:[%s4] sm:$0xf]
      %v1035 = vld [vmem:[%s4 + $0x4] sm:$0xf]
      %v1036 = vld [vmem:[%s4 + $0x8] sm:$0xf]
      %v1037 = vld [vmem:[%s4 + $0xc] sm:$0xf]
      %v1038 = vld [vmem:[%s5] sm:$0x1]
      %v1040 = vlaneseq
      %v1041 = vshrl.u32 %v1040, 7
      %v1042 = vsub.s32 0, %v1041
      %v1043 = vrot.slane %v1038, %v1042
      %1046 = vrot.lane.b32.xlu0 %v1033, 32
      %v1047 = vpop.permute.xlu0 %1046
      %v1052 = vunpack.c.l.b16 %v1034
      %v1053 = vunpack.c.l.b16 %v1035
      %v1054 = vunpack.c.l.b16 %v1036
      %v1055 = vunpack.c.l.b16 %v1037
      %v1056 = vpack.c.b16 %v1053, %v1052
      %v1057 = vpack.c.b16 %v1055, %v1054
      %v1061 = vsel %vm360, %v1047, 0
      %1063 = vmatprep.subr.bf16.mxu0 0
      %1064 = vmatpush1.bf16.msra.mxu0 0
      %1065 = vmatprep.subr.bf16.mxu0 0
      %1066 = vmatpush1.bf16.msra.mxu0 0
      %1067 = vmatprep.subr.bf16.mxu0 0
      %1068 = vmatpush1.bf16.msra.mxu0 0
      %1069 = vmatprep.subr.bf16.mxu0 0
      %1070 = vmatpush1.bf16.msra.mxu0 0
      %1071 = vmatprep.subr.bf16.mxu0 0
      %1072 = vmatpush1.bf16.msra.mxu0 0
      %1073 = vmatprep.subr.bf16.mxu0 0
      %1074 = vmatpush1.bf16.msra.mxu0 0
      %1075 = vmatprep.subr.bf16.mxu0 0
      %1076 = vmatpush1.bf16.msra.mxu0 %v1057
      %1077 = vmatprep.subr.bf16.mxu0 0
      %1078 = vmatpush1.bf16.msra.mxu0 %v1056
      %1079 = vmatprep.subr.bf16.mxu0 0
      %1080 = vmatpush2.bf16.msra.mxu0 0
      %1081 = vmatprep.subr.bf16.mxu0 0
      %1082 = vmatpush2.bf16.msra.mxu0 0
      %1083 = vmatprep.subr.bf16.mxu0 0
      %1084 = vmatpush2.bf16.msra.mxu0 0
      %1085 = vmatprep.subr.bf16.mxu0 0
      %1086 = vmatpush2.bf16.msra.mxu0 0
      %1087 = vmatprep.subr.bf16.mxu0 0
      %1088 = vmatpush2.bf16.msra.mxu0 0
      %1089 = vmatprep.subr.bf16.mxu0 0
      %1090 = vmatpush2.bf16.msra.mxu0 0
      %1091 = vmatprep.subr.bf16.mxu0 0
      %1092 = vmatpush2.bf16.msra.mxu0 0
      %1093 = vmatprep.subr.bf16.mxu0 0
      %1094 = vmatpush2.bf16.msra.mxu0 0
      %1095 = vmatprep.mubr.bf16.mxu0 0
      %1096 = vmatmul.mubr.bf16.gmra.mxu0 %v1061
      %v1097 = vpop.f32.mrf.mxu0
      %v1098 = vadd.f32 %v1043, %v1097
      %v1099 = vpop.f32.mrf.mxu0
      %v1100 = vpop.f32.mrf.mxu0
      %v1101 = vpop.f32.mrf.mxu0
      %1102 = vdwg.mxu0
      %v1103 = vmax.f32 %v1098, 0.0
      %v1104 = vld [vmem:[%s6] sm:$0x1]
      %v1106 = vlaneseq
      %v1107 = vshrl.u32 %v1106, 7
      %v1108 = vsub.s32 0, %v1107
      %v1109 = vrot.slane %v1104, %v1108
      %v1111 = vmul.f32 %v1103, %v1109
      %v1112 = vsel %vm360, %v1111, 0.0
      %1113 = vadd.xlane.f32.xlu0 %v1112
      %v1114 = vpop.xlane.xlu0 %1113
      %v1115 = vld [vmem:[#allocation3] sm:$0x1]
      %v1117 = vlaneseq
      %v1118 = vshrl.u32 %v1117, 7
      %v1119 = vsub.s32 0, %v1118
      %v1120 = vrot.slane %v1115, %v1119
      %v1122 = vadd.f32 %v1114, %v1120
      %vm1123 = vcmask 7168
      %1124 = vst.msk [vmem:[%s307] sm:$0xff] %vm1123, %v1122
      %p1125 = scmp.lt.s32.totalorder %s21, 1
      %s1126 = scalar_select %p1125, %s21, 1
      %s1127 = smul.addr %s1126, 8
      %s1128 = scalar_lea.vmem %s8, %s1127
      // Predicated region
      $region53: #{tpu_custom_call.1} parent=51 // pred_check
        %p1129 = pneg %p212
      $region54: #{tpu_custom_call.1} parent=51 // pred_check_branch
        %1131 = sbr.rel (%p1129) target = $region56
      $region55: #{tpu_custom_call.1} parent=51 // pred_region
        _
      $region56: #{tpu_custom_call.1} parent=51 // pred_fallthru
        _
    $region52: #{tpu_custom_call.1} parent=5 // pred_fallthru
      _
    %p1132 = scmp.le.s32.totalorder 2, %s16
    // Predicated region
    $region57: #{tpu_custom_call.1} parent=5 // pred_check
      %p1133 = pneg %p1132
    $region58: #{tpu_custom_call.1} parent=5 // pred_check_branch
      %1135 = sbr.rel (%p1133) target = $region60
    $region59: #{tpu_custom_call.1} parent=5 // pred_region
      %s1136 = ssub.s32 %s16, 2
      // Predicated region
      $region61: #{tpu_custom_call.1} parent=59 // pred_check
        %p1137 = pneg %p218
      $region62: #{tpu_custom_call.1} parent=59 // pred_check_branch
        %1139 = sbr.rel (%p1137) target = $region64
      $region63: #{tpu_custom_call.1} parent=59 // pred_region
        %p1140 = scmp.lt.s32.totalorder %s22, 1
        %s1141 = scalar_select %p1140, %s22, 1
        %s1142 = smul.addr %s1141, 8
        %s1143 = scalar_lea.vmem %s8, %s1142
      $region64: #{tpu_custom_call.1} parent=59 // pred_fallthru
        _
    $region60: #{tpu_custom_call.1} parent=5 // pred_fallthru
      _
  $region6: #{tpu_custom_call.1} parent=0 // loop_footer
    %s20 = sadd.s32 1, %s16
  $region7: #{tpu_custom_call.1} parent=0 // loop_footer_branch
    %15 = sbr.rel target = $region3
  $region8: #{tpu_custom_call.1} parent=0 // loop_exit
    _

</llo_original>
